<compile_context>
chip_gen: v7x
topology: tpu7x:2x2x1
jax: 0.10.0
libtpu: 0.0.40
codegen_flags: <defaults>
</compile_context>

<pallas_src>
import functools
import math

import jax
import jax.numpy as jnp
from jax.experimental import pallas as pl
from jax.experimental.pallas import tpu as pltpu

EPS = 1e-5
MATMUL_DTYPE = jnp.bfloat16   # jnp.float32 for exact-f32 numerics


# ----------------------------- kernel helpers ------------------------------

def _im2col_3x3(xpad, patch_ref, H, W):
    """xpad: (1, H+2, W+2, C) value; patch_ref: (1, H, W, 9*C) VMEM scratch.
    Assembles the im2col patch matrix (column blocks ordered (kh, kw, c) to
    match HWIO weights reshaped to (9*C, Cout)) and returns it as (H*W, 9*C)."""
    C = xpad.shape[-1]
    t = 0
    for kh in range(3):
        for kw in range(3):
            patch_ref[:, :, :, t * C:(t + 1) * C] = xpad[:, kh:kh + H, kw:kw + W, :]
            t += 1
    return patch_ref[...].reshape(H * W, 9 * C)


def _store_partial_stats(st_ref, y):
    """y: (M_tile, C) f32 conv output for this tile -> st_ref (1, 2, C)."""
    C = y.shape[-1]
    st_ref[:, 0:1, :] = jnp.sum(y, axis=0, keepdims=True).reshape(1, 1, C)
    st_ref[:, 1:2, :] = jnp.sum(y * y, axis=0, keepdims=True).reshape(1, 1, C)


def _bn_affine(stats, gamma, beta, inv_m):
    """stats: (T, 2, C) per-tile partial (sum, sumsq) in f32.
    Returns the folded training-mode BN affine (scale, shift), both (1, C)."""
    ssum = jnp.sum(stats[:, 0:1, :], axis=0)          # (1, C)
    ssq = jnp.sum(stats[:, 1:2, :], axis=0)           # (1, C)
    mean = ssum * inv_m
    var = ssq * inv_m - mean * mean                   # biased variance, f32
    scale = gamma * jax.lax.rsqrt(var + EPS)
    shift = beta - mean * scale
    return scale, shift


# --------------------------------- kernels -----------------------------------

def _phase1_kernel(*refs, H, W, use_1x1conv):
    """conv1 (no bias, single matmul) + BN1 partial stats + residual branch."""
    if use_1x1conv:
        (xpad_ref, w1_ref, w3_ref, b3_ref,
         y1_ref, st1_ref, r_ref, patch_ref) = refs
    else:
        (xpad_ref, w1_ref, y1_ref, st1_ref, r_ref, patch_ref) = refs
        w3_ref = b3_ref = None

    Cin = xpad_ref.shape[-1]
    Cout = y1_ref.shape[-1]

    xpad = xpad_ref[...]                                        # (1,H+2,W+2,Cin)
    patches = _im2col_3x3(xpad, patch_ref, H, W)                # (H*W, 9*Cin)
    y1 = jnp.dot(patches, w1_ref[...],
                 preferred_element_type=jnp.float32)            # (H*W, Cout) f32
    _store_partial_stats(st1_ref, y1)
    y1_ref[...] = y1.reshape(1, H, W, Cout).astype(y1_ref.dtype)

    # Residual branch reads the interior of xpad (no second copy of X in HBM).
    xin = xpad[:, 1:H + 1, 1:W + 1, :].reshape(H * W, Cin)
    if use_1x1conv:
        r = jnp.dot(xin, w3_ref[...],
                    preferred_element_type=jnp.float32) + b3_ref[...]
    else:
        r = xin.astype(jnp.float32)                             # Cin == Cout
    r_ref[...] = r.reshape(1, H, W, Cout).astype(r_ref.dtype)


def _phase2_kernel(y1_ref, st1_ref, g1_ref, be1_ref, w2_ref,
                   y2_ref, st2_ref, apad_ref, patch_ref, *, H, W, inv_m):
    """folded BN1 affine + ReLU + conv2 (no bias) + BN2 partial stats."""
    C = y1_ref.shape[-1]
    scale, shift = _bn_affine(st1_ref[...], g1_ref[...], be1_ref[...], inv_m)
    a1 = jnp.maximum(y1_ref[...].astype(jnp.float32) * scale + shift, 0.0)

    # Zero only the 1-wide halo ring of the padded-activation scratch, then
    # write the interior (halo stays zero regardless of grid partitioning).
    zdt = apad_ref.dtype
    apad_ref[:, 0:1, :, :] = jnp.zeros((1, 1, W + 2, C), zdt)
    apad_ref[:, H + 1:H + 2, :, :] = jnp.zeros((1, 1, W + 2, C), zdt)
    apad_ref[:, :, 0:1, :] = jnp.zeros((1, H + 2, 1, C), zdt)
    apad_ref[:, :, W + 1:W + 2, :] = jnp.zeros((1, H + 2, 1, C), zdt)
    apad_ref[:, 1:H + 1, 1:W + 1, :] = a1.astype(zdt)

    patches = _im2col_3x3(apad_ref[...], patch_ref, H, W)       # (H*W, 9*C)
    y2 = jnp.dot(patches, w2_ref[...],
                 preferred_element_type=jnp.float32)            # (H*W, C) f32
    _store_partial_stats(st2_ref, y2)
    y2_ref[...] = y2.reshape(1, H, W, C).astype(y2_ref.dtype)


def _phase3_kernel(y2_ref, r_ref, st2_ref, g2_ref, be2_ref, o_ref, *, inv_m):
    """folded BN2 affine + residual add + ReLU."""
    scale, shift = _bn_affine(st2_ref[...], g2_ref[...], be2_ref[...], inv_m)
    y2 = y2_ref[...].astype(jnp.float32)
    out = jnp.maximum(y2 * scale + shift + r_ref[...].astype(jnp.float32), 0.0)
    o_ref[...] = out.astype(o_ref.dtype)


# -------------------------------- wrapper -----------------------------------

def _nbytes(shape, dtype):
    return math.prod(shape) * jnp.dtype(dtype).itemsize


def _cparams(block_bytes, scratch_bytes=0):
    # 2x: BlockSpec double-buffers every pipelined operand; headroom covers
    # in-kernel temporaries (f32 accumulators, relayouts).
    limit = 2 * block_bytes + scratch_bytes + (8 << 20)
    return pltpu.CompilerParams(
        dimension_semantics=("parallel",),
        vmem_limit_bytes=int(limit))


def residual_block(x_nchw, params, use_1x1conv):
    """x_nchw: (N, Cin, H, W) float32.  params: dict of PyTorch-layout weights."""
    N, Cin, H, W = x_nchw.shape
    Cout = params["w1"].shape[0]
    if not use_1x1conv:
        assert Cin == Cout, "identity residual requires Cin == Cout"
    inv_m = 1.0 / float(N * H * W)
    mmdt = MATMUL_DTYPE

    # NCHW -> NHWC (channels on the 128-lane axis) + spatial zero-pad. Boundary
    # glue only; the kernels themselves never re-pad X.
    x = jnp.transpose(x_nchw, (0, 2, 3, 1))
    xpad = jnp.pad(x, ((0, 0), (1, 1), (1, 1), (0, 0))).astype(mmdt)

    # PyTorch OIHW -> HWIO, flattened to (9*Cin, Cout) matching the im2col order.
    w1m = jnp.transpose(params["w1"], (2, 3, 1, 0)).reshape(9 * Cin, Cout).astype(mmdt)
    w2m = jnp.transpose(params["w2"], (2, 3, 1, 0)).reshape(9 * Cout, Cout).astype(mmdt)
    # conv1/conv2 biases are intentionally dropped: a per-channel constant added
    # before training-mode BN cancels exactly.
    g1 = params["g1"].reshape(1, Cout).astype(jnp.float32)
    be1 = params["be1"].reshape(1, Cout).astype(jnp.float32)
    g2 = params["g2"].reshape(1, Cout).astype(jnp.float32)
    be2 = params["be2"].reshape(1, Cout).astype(jnp.float32)

    act_tile = (1, H, W, Cout)
    stat_tile = (1, 2, Cout)

    # ------------- phase 1: conv1 + residual branch + BN1 partial stats -------
    p1_inputs = [xpad, w1m]
    p1_specs = [pl.BlockSpec((1, H + 2, W + 2, Cin), lambda i: (i, 0, 0, 0)),
                pl.BlockSpec((9 * Cin, Cout), lambda i: (0, 0))]
    if use_1x1conv:
        w3m = params["w3"].reshape(Cout, Cin).T.astype(mmdt)           # (Cin, Cout)
        b3 = params["b3"].reshape(1, Cout).astype(jnp.float32)
        p1_inputs += [w3m, b3]
        p1_specs += [pl.BlockSpec((Cin, Cout), lambda i: (0, 0)),
                     pl.BlockSpec((1, Cout), lambda i: (0, 0))]

    p1_bytes = (_nbytes((1, H + 2, W + 2, Cin), mmdt)
                + _nbytes((9 * Cin, Cout), mmdt)
                + _nbytes(act_tile, mmdt)
                + _nbytes(stat_tile, jnp.float32)
                + _nbytes(act_tile, jnp.float32))
    p1_scratch = _nbytes((1, H, W, 9 * Cin), mmdt)

    y1raw, stats1, resid = pl.pallas_call(
        functools.partial(_phase1_kernel, H=H, W=W, use_1x1conv=use_1x1conv),
        grid=(N,),
        in_specs=p1_specs,
        out_specs=(pl.BlockSpec(act_tile, lambda i: (i, 0, 0, 0)),
                   pl.BlockSpec(stat_tile, lambda i: (i, 0, 0)),
                   pl.BlockSpec(act_tile, lambda i: (i, 0, 0, 0))),
        out_shape=(jax.ShapeDtypeStruct((N, H, W, Cout), mmdt),         # raw conv1
                   jax.ShapeDtypeStruct((N, 2, Cout), jnp.float32),     # BN1 stats
                   jax.ShapeDtypeStruct((N, H, W, Cout), jnp.float32)), # residual
        scratch_shapes=[pltpu.VMEM((1, H, W, 9 * Cin), mmdt)],
        compiler_params=_cparams(p1_bytes, p1_scratch),
    )(*p1_inputs)

    # ------------- phase 2: bn1 affine + relu + conv2 + BN2 partial stats -----
    p2_bytes = (2 * _nbytes(act_tile, mmdt)
                + _nbytes((N, 2, Cout), jnp.float32)
                + 2 * _nbytes((1, Cout), jnp.float32)
                + _nbytes((9 * Cout, Cout), mmdt)
                + _nbytes(stat_tile, jnp.float32))
    p2_scratch = (_nbytes((1, H + 2, W + 2, Cout), mmdt)
                  + _nbytes((1, H, W, 9 * Cout), mmdt))

    y2raw, stats2 = pl.pallas_call(
        functools.partial(_phase2_kernel, H=H, W=W, inv_m=inv_m),
        grid=(N,),
        in_specs=[pl.BlockSpec(act_tile, lambda i: (i, 0, 0, 0)),
                  pl.BlockSpec((N, 2, Cout), lambda i: (0, 0, 0)),
                  pl.BlockSpec((1, Cout), lambda i: (0, 0)),
                  pl.BlockSpec((1, Cout), lambda i: (0, 0)),
                  pl.BlockSpec((9 * Cout, Cout), lambda i: (0, 0))],
        out_specs=(pl.BlockSpec(act_tile, lambda i: (i, 0, 0, 0)),
                   pl.BlockSpec(stat_tile, lambda i: (i, 0, 0))),
        out_shape=(jax.ShapeDtypeStruct((N, H, W, Cout), mmdt),         # raw conv2
                   jax.ShapeDtypeStruct((N, 2, Cout), jnp.float32)),    # BN2 stats
        scratch_shapes=[pltpu.VMEM((1, H + 2, W + 2, Cout), mmdt),
                        pltpu.VMEM((1, H, W, 9 * Cout), mmdt)],
        compiler_params=_cparams(p2_bytes, p2_scratch),
    )(y1raw, stats1, g1, be1, w2m)

    # ------------- phase 3: bn2 affine + residual add + relu ------------------
    p3_bytes = (_nbytes(act_tile, mmdt)
                + 2 * _nbytes(act_tile, jnp.float32)
                + _nbytes((N, 2, Cout), jnp.float32)
                + 2 * _nbytes((1, Cout), jnp.float32))

    out_nhwc = pl.pallas_call(
        functools.partial(_phase3_kernel, inv_m=inv_m),
        grid=(N,),
        in_specs=[pl.BlockSpec(act_tile, lambda i: (i, 0, 0, 0)),
                  pl.BlockSpec(act_tile, lambda i: (i, 0, 0, 0)),
                  pl.BlockSpec((N, 2, Cout), lambda i: (0, 0, 0)),
                  pl.BlockSpec((1, Cout), lambda i: (0, 0)),
                  pl.BlockSpec((1, Cout), lambda i: (0, 0))],
        out_specs=pl.BlockSpec(act_tile, lambda i: (i, 0, 0, 0)),
        out_shape=jax.ShapeDtypeStruct((N, H, W, Cout), jnp.float32),
        compiler_params=_cparams(p3_bytes),
    )(y2raw, resid, stats2, g2, be2)

    return jnp.transpose(out_nhwc, (0, 3, 1, 2))      # back to NCHW


# ----------------------------- pure-JAX reference ---------------------------

def _reference(x, params, use_1x1conv):
    def conv(x, w, b, pad):
        y = jax.lax.conv_general_dilated(
            x, w, (1, 1), [(pad, pad), (pad, pad)],
            dimension_numbers=("NCHW", "OIHW", "NCHW"))
        return y + b[None, :, None, None]

    def bn(x, g, be):
        mean = x.mean(axis=(0, 2, 3), keepdims=True)
        var = ((x - mean) ** 2).mean(axis=(0, 2, 3), keepdims=True)
        return ((x - mean) / jnp.sqrt(var + EPS)
                * g[None, :, None, None] + be[None, :, None, None])

    y = jax.nn.relu(bn(conv(x, params["w1"], params["b1"], 1),
                       params["g1"], params["be1"]))
    y = bn(conv(y, params["w2"], params["b2"], 1), params["g2"], params["be2"])
    if use_1x1conv:
        x = conv(x, params["w3"], params["b3"], 0)
    return jax.nn.relu(y + x)


# ---------------------------------- main -------------------------------------

def _make_params(key, cin, cout, use_1x1conv):
    ks = jax.random.split(key, 10)
    p = {
        "w1": jax.random.normal(ks[0], (cout, cin, 3, 3), jnp.float32) * 0.1,
        "b1": jax.random.normal(ks[1], (cout,), jnp.float32) * 0.1,
        "w2": jax.random.normal(ks[2], (cout, cout, 3, 3), jnp.float32) * 0.1,
        "b2": jax.random.normal(ks[3], (cout,), jnp.float32) * 0.1,
        "g1": 1.0 + jax.random.normal(ks[4], (cout,), jnp.float32) * 0.1,
        "be1": jax.random.normal(ks[5], (cout,), jnp.float32) * 0.1,
        "g2": 1.0 + jax.random.normal(ks[6], (cout,), jnp.float32) * 0.1,
        "be2": jax.random.normal(ks[7], (cout,), jnp.float32) * 0.1,
    }
    if use_1x1conv:
        p["w3"] = jax.random.normal(ks[8], (cout, cin, 1, 1), jnp.float32) * 0.1
        p["b3"] = jax.random.normal(ks[9], (cout,), jnp.float32) * 0.1
    return p


if __name__ == "__main__":
    key = jax.random.PRNGKey(0)
    k_x1, k_p1, k_x2, k_p2 = jax.random.split(key, 4)

    # bf16 matmul operands (f32 accumulation) agree with the f32 reference to
    # ~1e-2; pure-f32 matmuls (MATMUL_DTYPE = jnp.float32) agree to ~1e-4.
    if jnp.dtype(MATMUL_DTYPE) == jnp.dtype(jnp.bfloat16):
        tol = dict(atol=5e-2, rtol=5e-2)
    else:
        tol = dict(atol=1e-4, rtol=1e-4)

    # Case 1: channel-changing block with 1x1 projection residual.
    N, Cin, Cout, H, W = 2, 4, 8, 16, 16
    x1 = jax.random.normal(k_x1, (N, Cin, H, W), jnp.float32)
    p1 = _make_params(k_p1, Cin, Cout, use_1x1conv=True)
    out1 = jax.block_until_ready(residual_block(x1, p1, use_1x1conv=True))
    ref1 = _reference(x1, p1, use_1x1conv=True)
    assert out1.shape == (N, Cout, H, W)
    assert jnp.allclose(out1, ref1, **tol), (
        "case 1 mismatch: max abs err %.3e"
        % float(jnp.max(jnp.abs(out1 - ref1))))

    # Case 2: identity residual (Cin == Cout, no conv3).
    N, C, H, W = 2, 4, 16, 16
    x2 = jax.random.normal(k_x2, (N, C, H, W), jnp.float32)
    p2 = _make_params(k_p2, C, C, use_1x1conv=False)
    out2 = jax.block_until_ready(residual_block(x2, p2, use_1x1conv=False))
    ref2 = _reference(x2, p2, use_1x1conv=False)
    assert out2.shape == (N, C, H, W)
    assert jnp.allclose(out2, ref2, **tol), (
        "case 2 mismatch: max abs err %.3e"
        % float(jnp.max(jnp.abs(out2 - ref2))))

    print("KERNEL_OK")
</pallas_src>

<mosaic_0001>
module attributes {stable_mosaic.version = 11 : i64} {
  func.func @_phase1_kernel(%arg0: i32, %arg1: memref<1x18x18x4xbf16, #tpu.memory_space<vmem>>, %arg2: memref<36x8xbf16, #tpu.memory_space<vmem>>, %arg3: memref<4x8xbf16, #tpu.memory_space<vmem>>, %arg4: memref<1x8xf32, #tpu.memory_space<vmem>>, %arg5: memref<1x16x16x8xbf16, #tpu.memory_space<vmem>>, %arg6: memref<1x2x8xf32, #tpu.memory_space<vmem>>, %arg7: memref<1x16x16x8xf32, #tpu.memory_space<vmem>>, %arg8: memref<1x16x16x36xbf16, #tpu.memory_space<vmem>>) attributes {dimension_semantics = [#tpu.dimension_semantics<parallel>], iteration_bounds = array<i64: 2>, scalar_prefetch = 0 : i64, scratch_operands = 1 : i64, tpu.core_type = #tpu.core_type<tc>, window_params = [{transform_indices = @transform_0, window_bounds = array<i64: 1, 18, 18, 4>}, {pipeline_mode = #tpu.pipeline_mode<synchronous>, transform_indices = @transform_1, window_bounds = array<i64: 36, 8>}, {pipeline_mode = #tpu.pipeline_mode<synchronous>, transform_indices = @transform_2, window_bounds = array<i64: 4, 8>}, {pipeline_mode = #tpu.pipeline_mode<synchronous>, transform_indices = @transform_3, window_bounds = array<i64: 1, 8>}, {transform_indices = @transform_4, window_bounds = array<i64: 1, 16, 16, 8>}, {transform_indices = @transform_5, window_bounds = array<i64: 1, 2, 8>}, {transform_indices = @transform_6, window_bounds = array<i64: 1, 16, 16, 8>}]} {
    %c0 = arith.constant 0 : index
    %c0_0 = arith.constant 0 : index
    %c0_1 = arith.constant 0 : index
    %c0_2 = arith.constant 0 : index
    %0 = vector.load %arg1[%c0, %c0_0, %c0_1, %c0_2] : memref<1x18x18x4xbf16, #tpu.memory_space<vmem>>, vector<1x18x18x4xbf16>
    %1 = vector.extract_strided_slice %0 {offsets = [0, 0, 0, 0], sizes = [1, 16, 16, 4], strides = [1, 1, 1, 1]} : vector<1x18x18x4xbf16> to vector<1x16x16x4xbf16>
    %c0_3 = arith.constant 0 : index
    %c0_4 = arith.constant 0 : index
    %c0_5 = arith.constant 0 : index
    %c0_6 = arith.constant 0 : index
    %2 = vector.load %arg8[%c0_3, %c0_4, %c0_5, %c0_6] : memref<1x16x16x36xbf16, #tpu.memory_space<vmem>>, vector<1x16x16x4xbf16>
    tpu.vector_store %arg8[%c0_3, %c0_4, %c0_5, %c0_6], %1 {strides = array<i32>} : memref<1x16x16x36xbf16, #tpu.memory_space<vmem>>, vector<1x16x16x4xbf16>,
    %3 = vector.extract_strided_slice %0 {offsets = [0, 0, 1, 0], sizes = [1, 16, 16, 4], strides = [1, 1, 1, 1]} : vector<1x18x18x4xbf16> to vector<1x16x16x4xbf16>
    %c0_7 = arith.constant 0 : index
    %c0_8 = arith.constant 0 : index
    %c0_9 = arith.constant 0 : index
    %c4 = arith.constant 4 : index
    %4 = vector.load %arg8[%c0_7, %c0_8, %c0_9, %c4] : memref<1x16x16x36xbf16, #tpu.memory_space<vmem>>, vector<1x16x16x4xbf16>
    tpu.vector_store %arg8[%c0_7, %c0_8, %c0_9, %c4], %3 {strides = array<i32>} : memref<1x16x16x36xbf16, #tpu.memory_space<vmem>>, vector<1x16x16x4xbf16>,
    %5 = vector.extract_strided_slice %0 {offsets = [0, 0, 2, 0], sizes = [1, 16, 16, 4], strides = [1, 1, 1, 1]} : vector<1x18x18x4xbf16> to vector<1x16x16x4xbf16>
    %c0_10 = arith.constant 0 : index
    %c0_11 = arith.constant 0 : index
    %c0_12 = arith.constant 0 : index
    %c8 = arith.constant 8 : index
    %6 = vector.load %arg8[%c0_10, %c0_11, %c0_12, %c8] : memref<1x16x16x36xbf16, #tpu.memory_space<vmem>>, vector<1x16x16x4xbf16>
    tpu.vector_store %arg8[%c0_10, %c0_11, %c0_12, %c8], %5 {strides = array<i32>} : memref<1x16x16x36xbf16, #tpu.memory_space<vmem>>, vector<1x16x16x4xbf16>,
    %7 = vector.extract_strided_slice %0 {offsets = [0, 1, 0, 0], sizes = [1, 16, 16, 4], strides = [1, 1, 1, 1]} : vector<1x18x18x4xbf16> to vector<1x16x16x4xbf16>
    %c0_13 = arith.constant 0 : index
    %c0_14 = arith.constant 0 : index
    %c0_15 = arith.constant 0 : index
    %c12 = arith.constant 12 : index
    %8 = vector.load %arg8[%c0_13, %c0_14, %c0_15, %c12] : memref<1x16x16x36xbf16, #tpu.memory_space<vmem>>, vector<1x16x16x4xbf16>
    tpu.vector_store %arg8[%c0_13, %c0_14, %c0_15, %c12], %7 {strides = array<i32>} : memref<1x16x16x36xbf16, #tpu.memory_space<vmem>>, vector<1x16x16x4xbf16>,
    %9 = vector.extract_strided_slice %0 {offsets = [0, 1, 1, 0], sizes = [1, 16, 16, 4], strides = [1, 1, 1, 1]} : vector<1x18x18x4xbf16> to vector<1x16x16x4xbf16>
    %c0_16 = arith.constant 0 : index
    %c0_17 = arith.constant 0 : index
    %c0_18 = arith.constant 0 : index
    %c16 = arith.constant 16 : index
    %10 = vector.load %arg8[%c0_16, %c0_17, %c0_18, %c16] : memref<1x16x16x36xbf16, #tpu.memory_space<vmem>>, vector<1x16x16x4xbf16>
    tpu.vector_store %arg8[%c0_16, %c0_17, %c0_18, %c16], %9 {strides = array<i32>} : memref<1x16x16x36xbf16, #tpu.memory_space<vmem>>, vector<1x16x16x4xbf16>,
    %11 = vector.extract_strided_slice %0 {offsets = [0, 1, 2, 0], sizes = [1, 16, 16, 4], strides = [1, 1, 1, 1]} : vector<1x18x18x4xbf16> to vector<1x16x16x4xbf16>
    %c0_19 = arith.constant 0 : index
    %c0_20 = arith.constant 0 : index
    %c0_21 = arith.constant 0 : index
    %c20 = arith.constant 20 : index
    %12 = vector.load %arg8[%c0_19, %c0_20, %c0_21, %c20] : memref<1x16x16x36xbf16, #tpu.memory_space<vmem>>, vector<1x16x16x4xbf16>
    tpu.vector_store %arg8[%c0_19, %c0_20, %c0_21, %c20], %11 {strides = array<i32>} : memref<1x16x16x36xbf16, #tpu.memory_space<vmem>>, vector<1x16x16x4xbf16>,
    %13 = vector.extract_strided_slice %0 {offsets = [0, 2, 0, 0], sizes = [1, 16, 16, 4], strides = [1, 1, 1, 1]} : vector<1x18x18x4xbf16> to vector<1x16x16x4xbf16>
    %c0_22 = arith.constant 0 : index
    %c0_23 = arith.constant 0 : index
    %c0_24 = arith.constant 0 : index
    %c24 = arith.constant 24 : index
    %14 = vector.load %arg8[%c0_22, %c0_23, %c0_24, %c24] : memref<1x16x16x36xbf16, #tpu.memory_space<vmem>>, vector<1x16x16x4xbf16>
    tpu.vector_store %arg8[%c0_22, %c0_23, %c0_24, %c24], %13 {strides = array<i32>} : memref<1x16x16x36xbf16, #tpu.memory_space<vmem>>, vector<1x16x16x4xbf16>,
    %15 = vector.extract_strided_slice %0 {offsets = [0, 2, 1, 0], sizes = [1, 16, 16, 4], strides = [1, 1, 1, 1]} : vector<1x18x18x4xbf16> to vector<1x16x16x4xbf16>
    %c0_25 = arith.constant 0 : index
    %c0_26 = arith.constant 0 : index
    %c0_27 = arith.constant 0 : index
    %c28 = arith.constant 28 : index
    %16 = vector.load %arg8[%c0_25, %c0_26, %c0_27, %c28] : memref<1x16x16x36xbf16, #tpu.memory_space<vmem>>, vector<1x16x16x4xbf16>
    tpu.vector_store %arg8[%c0_25, %c0_26, %c0_27, %c28], %15 {strides = array<i32>} : memref<1x16x16x36xbf16, #tpu.memory_space<vmem>>, vector<1x16x16x4xbf16>,
    %17 = vector.extract_strided_slice %0 {offsets = [0, 2, 2, 0], sizes = [1, 16, 16, 4], strides = [1, 1, 1, 1]} : vector<1x18x18x4xbf16> to vector<1x16x16x4xbf16>
    %c0_28 = arith.constant 0 : index
    %c0_29 = arith.constant 0 : index
    %c0_30 = arith.constant 0 : index
    %c32 = arith.constant 32 : index
    %18 = vector.load %arg8[%c0_28, %c0_29, %c0_30, %c32] : memref<1x16x16x36xbf16, #tpu.memory_space<vmem>>, vector<1x16x16x4xbf16>
    tpu.vector_store %arg8[%c0_28, %c0_29, %c0_30, %c32], %17 {strides = array<i32>} : memref<1x16x16x36xbf16, #tpu.memory_space<vmem>>, vector<1x16x16x4xbf16>,
    %c0_31 = arith.constant 0 : index
    %c0_32 = arith.constant 0 : index
    %c0_33 = arith.constant 0 : index
    %c0_34 = arith.constant 0 : index
    %19 = vector.load %arg8[%c0_31, %c0_32, %c0_33, %c0_34] : memref<1x16x16x36xbf16, #tpu.memory_space<vmem>>, vector<1x16x16x36xbf16>
    %20 = vector.shape_cast %19 : vector<1x16x16x36xbf16> to vector<256x36xbf16>
    %c0_35 = arith.constant 0 : index
    %c0_36 = arith.constant 0 : index
    %21 = vector.load %arg2[%c0_35, %c0_36] : memref<36x8xbf16, #tpu.memory_space<vmem>>, vector<36x8xbf16>
    %cst = arith.constant dense<0.000000e+00> : vector<256x8xf32>
    %22 = tpu.matmul %20, %21, %cst {dimension_numbers = #tpu.dot_dimension_numbers<[1], [0], [0], [1], [0, 0, 1, 1], [], []>} : vector<256x36xbf16>, vector<36x8xbf16>, vector<256x8xf32> -> vector<256x8xf32>
    %cst_37 = arith.constant dense<0.000000e+00> : vector<8xf32>
    %23 = vector.multi_reduction <add>, %22, %cst_37 [0] : vector<256x8xf32> to vector<8xf32>
    %24 = vector.shape_cast %23 : vector<8xf32> to vector<1x8xf32>
    %25 = vector.shape_cast %24 : vector<1x8xf32> to vector<1x1x8xf32>
    %c0_38 = arith.constant 0 : index
    %c0_39 = arith.constant 0 : index
    %c0_40 = arith.constant 0 : index
    %26 = vector.load %arg6[%c0_38, %c0_39, %c0_40] : memref<1x2x8xf32, #tpu.memory_space<vmem>>, vector<1x1x8xf32>
    tpu.vector_store %arg6[%c0_38, %c0_39, %c0_40], %25 {strides = array<i32>} : memref<1x2x8xf32, #tpu.memory_space<vmem>>, vector<1x1x8xf32>,
    %27 = arith.mulf %22, %22 : vector<256x8xf32>
    %cst_41 = arith.constant dense<0.000000e+00> : vector<8xf32>
    %28 = vector.multi_reduction <add>, %27, %cst_41 [0] : vector<256x8xf32> to vector<8xf32>
    %29 = vector.shape_cast %28 : vector<8xf32> to vector<1x8xf32>
    %30 = vector.shape_cast %29 : vector<1x8xf32> to vector<1x1x8xf32>
    %c0_42 = arith.constant 0 : index
    %c1 = arith.constant 1 : index
    %c0_43 = arith.constant 0 : index
    %31 = vector.load %arg6[%c0_42, %c1, %c0_43] : memref<1x2x8xf32, #tpu.memory_space<vmem>>, vector<1x1x8xf32>
    tpu.vector_store %arg6[%c0_42, %c1, %c0_43], %30 {strides = array<i32>} : memref<1x2x8xf32, #tpu.memory_space<vmem>>, vector<1x1x8xf32>,
    %32 = vector.shape_cast %22 : vector<256x8xf32> to vector<1x16x16x8xf32>
    %33 = arith.truncf %32 : vector<1x16x16x8xf32> to vector<1x16x16x8xbf16>
    %c0_44 = arith.constant 0 : index
    %c0_45 = arith.constant 0 : index
    %c0_46 = arith.constant 0 : index
    %c0_47 = arith.constant 0 : index
    %34 = vector.load %arg5[%c0_44, %c0_45, %c0_46, %c0_47] : memref<1x16x16x8xbf16, #tpu.memory_space<vmem>>, vector<1x16x16x8xbf16>
    tpu.vector_store %arg5[%c0_44, %c0_45, %c0_46, %c0_47], %33 {strides = array<i32>} : memref<1x16x16x8xbf16, #tpu.memory_space<vmem>>, vector<1x16x16x8xbf16>,
    %35 = vector.extract_strided_slice %0 {offsets = [0, 1, 1, 0], sizes = [1, 16, 16, 4], strides = [1, 1, 1, 1]} : vector<1x18x18x4xbf16> to vector<1x16x16x4xbf16>
    %36 = vector.shape_cast %35 : vector<1x16x16x4xbf16> to vector<256x4xbf16>
    %c0_48 = arith.constant 0 : index
    %c0_49 = arith.constant 0 : index
    %37 = vector.load %arg3[%c0_48, %c0_49] : memref<4x8xbf16, #tpu.memory_space<vmem>>, vector<4x8xbf16>
    %cst_50 = arith.constant dense<0.000000e+00> : vector<256x8xf32>
    %38 = tpu.matmul %36, %37, %cst_50 {dimension_numbers = #tpu.dot_dimension_numbers<[1], [0], [0], [1], [0, 0, 1, 1], [], []>} : vector<256x4xbf16>, vector<4x8xbf16>, vector<256x8xf32> -> vector<256x8xf32>
    %c0_51 = arith.constant 0 : index
    %c0_52 = arith.constant 0 : index
    %39 = vector.load %arg4[%c0_51, %c0_52] : memref<1x8xf32, #tpu.memory_space<vmem>>, vector<1x8xf32>
    %40 = vector.broadcast %39 : vector<1x8xf32> to vector<256x8xf32>
    %41 = arith.addf %38, %40 : vector<256x8xf32>
    %42 = vector.shape_cast %41 : vector<256x8xf32> to vector<1x16x16x8xf32>
    %c0_53 = arith.constant 0 : index
    %c0_54 = arith.constant 0 : index
    %c0_55 = arith.constant 0 : index
    %c0_56 = arith.constant 0 : index
    %43 = vector.load %arg7[%c0_53, %c0_54, %c0_55, %c0_56] : memref<1x16x16x8xf32, #tpu.memory_space<vmem>>, vector<1x16x16x8xf32>
    tpu.vector_store %arg7[%c0_53, %c0_54, %c0_55, %c0_56], %42 {strides = array<i32>} : memref<1x16x16x8xf32, #tpu.memory_space<vmem>>, vector<1x16x16x8xf32>,
    return
  }
  func.func @transform_0(%arg0: i32) -> (i32, i32, i32, i32) {
    %c0_i32 = arith.constant 0 : i32
    %c0_i32_0 = arith.constant 0 : i32
    %c0_i32_1 = arith.constant 0 : i32
    %c0_i32_2 = arith.constant 0 : i32
    return %arg0, %c0_i32, %c0_i32_0, %c0_i32_1 : i32, i32, i32, i32
  }
  func.func @transform_1(%arg0: i32) -> (i32, i32) {
    %c0_i32 = arith.constant 0 : i32
    %c0_i32_0 = arith.constant 0 : i32
    %c0_i32_1 = arith.constant 0 : i32
    return %c0_i32, %c0_i32_0 : i32, i32
  }
  func.func @transform_2(%arg0: i32) -> (i32, i32) {
    %c0_i32 = arith.constant 0 : i32
    %c0_i32_0 = arith.constant 0 : i32
    %c0_i32_1 = arith.constant 0 : i32
    return %c0_i32, %c0_i32_0 : i32, i32
  }
  func.func @transform_3(%arg0: i32) -> (i32, i32) {
    %c0_i32 = arith.constant 0 : i32
    %c0_i32_0 = arith.constant 0 : i32
    %c0_i32_1 = arith.constant 0 : i32
    return %c0_i32, %c0_i32_0 : i32, i32
  }
  func.func @transform_4(%arg0: i32) -> (i32, i32, i32, i32) {
    %c0_i32 = arith.constant 0 : i32
    %c0_i32_0 = arith.constant 0 : i32
    %c0_i32_1 = arith.constant 0 : i32
    %c0_i32_2 = arith.constant 0 : i32
    return %arg0, %c0_i32, %c0_i32_0, %c0_i32_1 : i32, i32, i32, i32
  }
  func.func @transform_5(%arg0: i32) -> (i32, i32, i32) {
    %c0_i32 = arith.constant 0 : i32
    %c0_i32_0 = arith.constant 0 : i32
    %c0_i32_1 = arith.constant 0 : i32
    return %arg0, %c0_i32, %c0_i32_0 : i32, i32, i32
  }
  func.func @transform_6(%arg0: i32) -> (i32, i32, i32, i32) {
    %c0_i32 = arith.constant 0 : i32
    %c0_i32_0 = arith.constant 0 : i32
    %c0_i32_1 = arith.constant 0 : i32
    %c0_i32_2 = arith.constant 0 : i32
    return %arg0, %c0_i32, %c0_i32_0, %c0_i32_1 : i32, i32, i32, i32
  }
}

</mosaic_0001>

<llo_original>
// kernel: tpu_custom_call.1
$region0: #{tpu_custom_call.1}
  #allocation0 [shape = 'u32[]', space=smem, size = 0x4, offset = 0x4, fixed_abs, tag = 'smem constant byte address 0x4 - core index']
  #allocation1 [shape = 'u32[144,128]{1,0:T(1,128)}', space=vmem, size = 0x12000, scoped, tag = 'internal scratch']
  #allocation2 [shape = 'bf16[1,16,16,36]{3,2,1,0:T(16,128)(2,1)}', space=vmem, size = 0x10000, scoped, tag = 'scratch operand']
  %s0 = inlined_call_operand.vmem [shape: bf16[2,18,18,4], index: 0, kind: input, shape index: {}]
  %s1 = inlined_call_operand.vmem [shape: bf16[36,8], index: 1, kind: input, shape index: {}]
  %s2 = inlined_call_operand.vmem [shape: bf16[4,8], index: 2, kind: input, shape index: {}]
  %s3 = inlined_call_operand.vmem [shape: f32[1,8], index: 3, kind: input, shape index: {}]
  %s4 = inlined_call_operand.vmem [shape: bf16[2,16,16,8], index: 4, kind: output, shape index: {0}]
  %s5 = inlined_call_operand.hbm [shape: f32[2,2,8], index: 5, kind: output, shape index: {1}]
  %s6 = inlined_call_operand.vmem [shape: f32[2,16,16,8], index: 6, kind: output, shape index: {2}]
  %7 = xla_tuple %s4, %s5, %s6
  %s8 = sld [smem:[#allocation0]]
  $region65: #{tpu_custom_call.1} parent=0
    _
  %s10 = ssub.s32 1, %s8
  %s11 = scalar_select 0, %s10, %s8
  $region1: #{tpu_custom_call.1} parent=0
    #allocation3 [shape = 'u8[2048]{0}', space=vmem, size = 0x800, scoped, tag = 'output window, operand 1']
    #allocation4 [shape = 's32[2]{0}', space=sflag, size = 0x8, scoped, tag = 'scoped memory for tpu_custom_call.1']
    %12 = vsyncpa [#allocation4], 0
    %s13 = scalar_lea.sflag [#allocation4], 1
    %14 = vsyncpa %s13, 0
    loop: start=0, step=1, limit=4
    $region2: #{tpu_custom_call.1} parent=1 // loop_pre_header
      _
    $region3: #{tpu_custom_call.1} parent=1 // loop_header
      %s16 = sphi 0, %s20
      %p17 = scmp.ge.s32.totalorder %s16, 4
      %s26 = sphi 0, %s28
      %s29 = sphi 0, %s26
      %s30 = sphi 0, %s29
      %s46 = sphi 0, %s30
      %s50 = sphi 0, %s50
      %s52 = sphi 0, %s50
      %s53 = sphi 0, %s52
      %s67 = sphi 0, %s53
      %s71 = sphi 0, %s71
      %s73 = sphi 0, %s71
      %s74 = sphi 0, %s73
      %s88 = sphi 0, %s74
      %s92 = sphi 0, %s92
      %s94 = sphi 0, %s92
      %s95 = sphi 0, %s94
      %s109 = sphi 0, %s95
      %s115 = sphi 0, %s117
      %s118 = sphi 0, %s115
      %s119 = sphi 0, %s118
      %s135 = sphi 0, %s119
      %s141 = sphi 0, %s143
      %s144 = sphi 0, %s141
      %s145 = sphi 0, %s144
      %s161 = sphi 0, %s145
      %s167 = sphi 0, %s169
      %s170 = sphi 0, %s167
      %s171 = sphi 0, %s170
      %s187 = sphi 0, %s171
    $region4: #{tpu_custom_call.1} parent=1 // loop_header_branch
      %19 = sbr.rel (%p17) target = $region8
    $region5: #{tpu_custom_call.1} parent=1 // loop_body
      %s21 = ssub.s32 %s16, 1
      %s22 = ssub.s32 %s16, 2
      %s23 = sadd.s32 %s16, 1
      %s24 = ssub.s32 %s16, %s23
      %p25 = scmp.eq.s32.totalorder %s24, 0
      %s27 = sadd.s32 %s26, 1
      %s28 = scalar_select %p25, %s26, %s27
      %p31 = pneg %p25
      %p32 = scmp.eq.s32.totalorder %s16, 1
      %p33 = por %p31, %p32
      %p34 = scmp.ne.s32.totalorder %s26, %s29
      %p35 = scmp.eq.s32.totalorder %s16, 0
      %p36 = por %p34, %p35
      %p37 = scmp.ne.s32.totalorder %s26, %s29
      %p38 = scmp.eq.s32.totalorder %s21, 1
      %p39 = por %p37, %p38
      %p40 = scmp.ne.s32.totalorder %s29, %s30
      %p41 = scmp.eq.s32.totalorder %s21, 0
      %p42 = por %p40, %p41
      %p43 = scmp.ne.s32.totalorder %s29, %s30
      %p44 = scmp.eq.s32.totalorder %s22, 1
      %p45 = por %p43, %p44
      %p47 = scmp.ne.s32.totalorder %s30, %s46
      %p48 = scmp.eq.s32.totalorder %s22, 0
      %p49 = por %p47, %p48
      %s51 = sadd.s32 %s50, 1
      %p54 = scmp.eq.s32.totalorder %s16, 1
      %p55 = scmp.ne.s32.totalorder %s50, %s52
      %p56 = scmp.eq.s32.totalorder %s16, 0
      %p57 = por %p55, %p56
      %p58 = scmp.ne.s32.totalorder %s50, %s52
      %p59 = scmp.eq.s32.totalorder %s21, 1
      %p60 = por %p58, %p59
      %p61 = scmp.ne.s32.totalorder %s52, %s53
      %p62 = scmp.eq.s32.totalorder %s21, 0
      %p63 = por %p61, %p62
      %p64 = scmp.ne.s32.totalorder %s52, %s53
      %p65 = scmp.eq.s32.totalorder %s22, 1
      %p66 = por %p64, %p65
      %p68 = scmp.ne.s32.totalorder %s53, %s67
      %p69 = scmp.eq.s32.totalorder %s22, 0
      %p70 = por %p68, %p69
      %s72 = sadd.s32 %s71, 1
      %p75 = scmp.eq.s32.totalorder %s16, 1
      %p76 = scmp.ne.s32.totalorder %s71, %s73
      %p77 = scmp.eq.s32.totalorder %s16, 0
      %p78 = por %p76, %p77
      %p79 = scmp.ne.s32.totalorder %s71, %s73
      %p80 = scmp.eq.s32.totalorder %s21, 1
      %p81 = por %p79, %p80
      %p82 = scmp.ne.s32.totalorder %s73, %s74
      %p83 = scmp.eq.s32.totalorder %s21, 0
      %p84 = por %p82, %p83
      %p85 = scmp.ne.s32.totalorder %s73, %s74
      %p86 = scmp.eq.s32.totalorder %s22, 1
      %p87 = por %p85, %p86
      %p89 = scmp.ne.s32.totalorder %s74, %s88
      %p90 = scmp.eq.s32.totalorder %s22, 0
      %p91 = por %p89, %p90
      %s93 = sadd.s32 %s92, 1
      %p96 = scmp.eq.s32.totalorder %s16, 1
      %p97 = scmp.ne.s32.totalorder %s92, %s94
      %p98 = scmp.eq.s32.totalorder %s16, 0
      %p99 = por %p97, %p98
      %p100 = scmp.ne.s32.totalorder %s92, %s94
      %p101 = scmp.eq.s32.totalorder %s21, 1
      %p102 = por %p100, %p101
      %p103 = scmp.ne.s32.totalorder %s94, %s95
      %p104 = scmp.eq.s32.totalorder %s21, 0
      %p105 = por %p103, %p104
      %p106 = scmp.ne.s32.totalorder %s94, %s95
      %p107 = scmp.eq.s32.totalorder %s22, 1
      %p108 = por %p106, %p107
      %p110 = scmp.ne.s32.totalorder %s95, %s109
      %p111 = scmp.eq.s32.totalorder %s22, 0
      %p112 = por %p110, %p111
      %s113 = ssub.s32 %s16, %s23
      %p114 = scmp.eq.s32.totalorder %s113, 0
      %s116 = sadd.s32 %s115, 1
      %s117 = scalar_select %p114, %s115, %s116
      %p120 = pneg %p114
      %p121 = scmp.eq.s32.totalorder %s16, 1
      %p122 = por %p120, %p121
      %p123 = scmp.ne.s32.totalorder %s115, %s118
      %p124 = scmp.eq.s32.totalorder %s16, 0
      %p125 = por %p123, %p124
      %p126 = scmp.ne.s32.totalorder %s115, %s118
      %p127 = scmp.eq.s32.totalorder %s21, 1
      %p128 = por %p126, %p127
      %p129 = scmp.ne.s32.totalorder %s118, %s119
      %p130 = scmp.eq.s32.totalorder %s21, 0
      %p131 = por %p129, %p130
      %p132 = scmp.ne.s32.totalorder %s118, %s119
      %p133 = scmp.eq.s32.totalorder %s22, 1
      %p134 = por %p132, %p133
      %p136 = scmp.ne.s32.totalorder %s119, %s135
      %p137 = scmp.eq.s32.totalorder %s22, 0
      %p138 = por %p136, %p137
      %s139 = ssub.s32 %s16, %s23
      %p140 = scmp.eq.s32.totalorder %s139, 0
      %s142 = sadd.s32 %s141, 1
      %s143 = scalar_select %p140, %s141, %s142
      %p146 = pneg %p140
      %p147 = scmp.eq.s32.totalorder %s16, 1
      %p148 = por %p146, %p147
      %p149 = scmp.ne.s32.totalorder %s141, %s144
      %p150 = scmp.eq.s32.totalorder %s16, 0
      %p151 = por %p149, %p150
      %p152 = scmp.ne.s32.totalorder %s141, %s144
      %p153 = scmp.eq.s32.totalorder %s21, 1
      %p154 = por %p152, %p153
      %p155 = scmp.ne.s32.totalorder %s144, %s145
      %p156 = scmp.eq.s32.totalorder %s21, 0
      %p157 = por %p155, %p156
      %p158 = scmp.ne.s32.totalorder %s144, %s145
      %p159 = scmp.eq.s32.totalorder %s22, 1
      %p160 = por %p158, %p159
      %p162 = scmp.ne.s32.totalorder %s145, %s161
      %p163 = scmp.eq.s32.totalorder %s22, 0
      %p164 = por %p162, %p163
      %s165 = ssub.s32 %s16, %s23
      %p166 = scmp.eq.s32.totalorder %s165, 0
      %s168 = sadd.s32 %s167, 1
      %s169 = scalar_select %p166, %s167, %s168
      %p172 = pneg %p166
      %p173 = scmp.eq.s32.totalorder %s16, 1
      %p174 = por %p172, %p173
      %p175 = scmp.ne.s32.totalorder %s167, %s170
      %p176 = scmp.eq.s32.totalorder %s16, 0
      %p177 = por %p175, %p176
      %p178 = scmp.ne.s32.totalorder %s167, %s170
      %p179 = scmp.eq.s32.totalorder %s21, 1
      %p180 = por %p178, %p179
      %p181 = scmp.ne.s32.totalorder %s170, %s171
      %p182 = scmp.eq.s32.totalorder %s21, 0
      %p183 = por %p181, %p182
      %p184 = scmp.ne.s32.totalorder %s170, %s171
      %p185 = scmp.eq.s32.totalorder %s22, 1
      %p186 = por %p184, %p185
      %p188 = scmp.ne.s32.totalorder %s171, %s187
      %p189 = scmp.eq.s32.totalorder %s22, 0
      %p190 = por %p188, %p189
      %p191 = scmp.le.s32.totalorder 1, %s16
      %p192 = scmp.lt.s32.totalorder %s16, 3
      %p193 = pnand %p191, %p192
      %p194 = pneg %p193
      // Predicated region
      $region9: #{tpu_custom_call.1} parent=5 // pred_check
        _
      $region10: #{tpu_custom_call.1} parent=5 // pred_check_branch
        %196 = sbr.rel (%p193) target = $region12
      $region11: #{tpu_custom_call.1} parent=5 // pred_region
        %s197 = ssub.s32 %s16, 1
        // Predicated region
        $region13: #{tpu_custom_call.1} parent=11 // pred_check
          %p198 = pneg %p63
        $region14: #{tpu_custom_call.1} parent=11 // pred_check_branch
          %200 = sbr.rel (%p198) target = $region16
        $region15: #{tpu_custom_call.1} parent=11 // pred_region
          _
        $region16: #{tpu_custom_call.1} parent=11 // pred_fallthru
          _
        // Predicated region
        $region17: #{tpu_custom_call.1} parent=11 // pred_check
          %p201 = pneg %p84
        $region18: #{tpu_custom_call.1} parent=11 // pred_check_branch
          %203 = sbr.rel (%p201) target = $region20
        $region19: #{tpu_custom_call.1} parent=11 // pred_region
          _
        $region20: #{tpu_custom_call.1} parent=11 // pred_fallthru
          _
        // Predicated region
        $region21: #{tpu_custom_call.1} parent=11 // pred_check
          %p204 = pneg %p105
        $region22: #{tpu_custom_call.1} parent=11 // pred_check_branch
          %206 = sbr.rel (%p204) target = $region24
        $region23: #{tpu_custom_call.1} parent=11 // pred_region
          _
        $region24: #{tpu_custom_call.1} parent=11 // pred_fallthru
          _
      $region12: #{tpu_custom_call.1} parent=5 // pred_fallthru
        _
      %p207 = scmp.lt.s32.totalorder %s16, 2
      // Predicated region
      $region25: #{tpu_custom_call.1} parent=5 // pred_check
        %p208 = pneg %p207
      $region26: #{tpu_custom_call.1} parent=5 // pred_check_branch
        %210 = sbr.rel (%p208) target = $region28
      $region27: #{tpu_custom_call.1} parent=5 // pred_region
        // Predicated region
        $region29: #{tpu_custom_call.1} parent=27 // pred_check
          %p211 = pneg %p36
        $region30: #{tpu_custom_call.1} parent=27 // pred_check_branch
          %213 = sbr.rel (%p211) target = $region32
        $region31: #{tpu_custom_call.1} parent=27 // pred_region
          %p214 = scmp.lt.s32.totalorder %s16, 1
          %s215 = scalar_select %p214, %s16, 1
          %s216 = smul.addr %s215, 54
          %s217 = smul.addr %s216, 4
          %s218 = scalar_lea.vmem %s0, %s217
        $region32: #{tpu_custom_call.1} parent=27 // pred_fallthru
          _
      $region28: #{tpu_custom_call.1} parent=5 // pred_fallthru
        _
      %p219 = scmp.le.s32.totalorder 1, %s16
      %p220 = scmp.lt.s32.totalorder %s16, 3
      %p221 = pnand %p219, %p220
      %p222 = pneg %p221
      // Predicated region
      $region33: #{tpu_custom_call.1} parent=5 // pred_check
        _
      $region34: #{tpu_custom_call.1} parent=5 // pred_check_branch
        %224 = sbr.rel (%p221) target = $region36
      $region35: #{tpu_custom_call.1} parent=5 // pred_region
        %s225 = ssub.s32 %s16, 1
        %p226 = scmp.lt.s32.totalorder %s21, 1
        %s227 = scalar_select %p226, %s21, 1
        %s228 = smul.addr %s227, 54
        %s229 = smul.addr %s228, 4
        %s230 = scalar_lea.vmem %s0, %s229
        %p231 = pneg %p42
        %p232 = pneg %p39
        %p233 = pneg %p63
        %p234 = pneg %p60
        %p235 = pneg %p84
        %p236 = pneg %p81
        %p237 = pneg %p105
        %p238 = pneg %p102
        %p239 = pneg %p131
        %p240 = pneg %p128
        %p241 = scmp.lt.s32.totalorder %s21, 1
        %s242 = scalar_select %p241, %s21, 1
        %s243 = smul.addr %s242, 32
        %s244 = smul.addr %s243, 4
        %s245 = scalar_lea.vmem %s4, %s244
        %p246 = pneg %p157
        %p247 = pneg %p154
        %s248 = sand.u32 %s144, 1
        %s249 = scalar_lea.sflag [#allocation4], %s248
        %s250 = sand.u32 %s144, 1
        %s251 = smul.addr %s250, 2
        %s252 = scalar_lea.vmem [#allocation3], %s251
        %p253 = pneg %p183
        %p254 = pneg %p180
        %p255 = scmp.lt.s32.totalorder %s21, 1
        %s256 = scalar_select %p255, %s21, 1
        %s257 = smul.addr %s256, 32
        %s258 = smul.addr %s257, 8
        %s259 = scalar_lea.vmem %s6, %s258
        %p260 = scmp.lt.s32.totalorder %s21, 1
        %s261 = scalar_select %p260, %s21, 1
        %s262 = smul.addr %s261, 54
        %s263 = smul.addr %s262, 4
        %s264 = scalar_lea.vmem %s0, %s263
        %p265 = scmp.lt.s32.totalorder %s21, 1
        %s266 = scalar_select %p265, %s21, 1
        %s267 = smul.addr %s266, 32
        %s268 = smul.addr %s267, 4
        %s269 = scalar_lea.vmem %s4, %s268
        %p270 = scmp.lt.s32.totalorder %s21, 1
        %s271 = scalar_select %p270, %s21, 1
        %s272 = smul.addr %s271, 32
        %s273 = smul.addr %s272, 8
        %s274 = scalar_lea.vmem %s6, %s273
        %v276 = vld [vmem:[%s264] sm:$0xf]
        %v277 = vld [vmem:[%s264 + $0x4] sm:$0xf]
        %v278 = vld [vmem:[%s264 + $0x8] sm:$0x1]
        %v279 = vld [vmem:[%s264 + $0xc] sm:$0xf]
        %v280 = vld [vmem:[%s264 + $0x10] sm:$0xf]
        %v281 = vld [vmem:[%s264 + $0x14] sm:$0x1]
        %v282 = vld [vmem:[%s264 + $0x18] sm:$0xf]
        %v283 = vld [vmem:[%s264 + $0x1c] sm:$0xf]
        %v284 = vld [vmem:[%s264 + $0x20] sm:$0x1]
        %v285 = vld [vmem:[%s264 + $0x24] sm:$0xf]
        %v286 = vld [vmem:[%s264 + $0x28] sm:$0xf]
        %v287 = vld [vmem:[%s264 + $0x2c] sm:$0x1]
        %v288 = vld [vmem:[%s264 + $0x30] sm:$0xf]
        %v289 = vld [vmem:[%s264 + $0x34] sm:$0xf]
        %v290 = vld [vmem:[%s264 + $0x38] sm:$0x1]
        %v291 = vld [vmem:[%s264 + $0x3c] sm:$0xf]
        %v292 = vld [vmem:[%s264 + $0x40] sm:$0xf]
        %v293 = vld [vmem:[%s264 + $0x44] sm:$0x1]
        %v294 = vld [vmem:[%s264 + $0x48] sm:$0xf]
        %v295 = vld [vmem:[%s264 + $0x4c] sm:$0xf]
        %v296 = vld [vmem:[%s264 + $0x50] sm:$0x1]
        %v297 = vld [vmem:[%s264 + $0x54] sm:$0xf]
        %v298 = vld [vmem:[%s264 + $0x58] sm:$0xf]
        %v299 = vld [vmem:[%s264 + $0x5c] sm:$0x1]
        %v300 = vld [vmem:[%s264 + $0x60] sm:$0xf]
        %v301 = vld [vmem:[%s264 + $0x64] sm:$0xf]
        %v302 = vld [vmem:[%s264 + $0x68] sm:$0x1]
        %v303 = vld [vmem:[%s264 + $0x6c] sm:$0xf]
        %v304 = vld [vmem:[%s264 + $0x70] sm:$0xf]
        %v305 = vld [vmem:[%s264 + $0x74] sm:$0x1]
        %v306 = vld [vmem:[%s264 + $0x78] sm:$0xf]
        %v307 = vld [vmem:[%s264 + $0x7c] sm:$0xf]
        %v308 = vld [vmem:[%s264 + $0x80] sm:$0x1]
        %v309 = vld [vmem:[%s264 + $0x84] sm:$0xf]
        %v310 = vld [vmem:[%s264 + $0x88] sm:$0xf]
        %v311 = vld [vmem:[%s264 + $0x8c] sm:$0x1]
        %v312 = vld [vmem:[%s264 + $0x90] sm:$0xf]
        %v313 = vld [vmem:[%s264 + $0x94] sm:$0xf]
        %v314 = vld [vmem:[%s264 + $0x98] sm:$0x1]
        %v315 = vld [vmem:[%s264 + $0x9c] sm:$0xf]
        %v316 = vld [vmem:[%s264 + $0xa0] sm:$0xf]
        %v317 = vld [vmem:[%s264 + $0xa4] sm:$0x1]
        %v318 = vld [vmem:[%s264 + $0xa8] sm:$0xf]
        %v319 = vld [vmem:[%s264 + $0xac] sm:$0xf]
        %v320 = vld [vmem:[%s264 + $0xb0] sm:$0x1]
        %v321 = vld [vmem:[%s264 + $0xb4] sm:$0xf]
        %v322 = vld [vmem:[%s264 + $0xb8] sm:$0xf]
        %v323 = vld [vmem:[%s264 + $0xbc] sm:$0x1]
        %v324 = vld [vmem:[%s264 + $0xc0] sm:$0xf]
        %v325 = vld [vmem:[%s264 + $0xc4] sm:$0xf]
        %v326 = vld [vmem:[%s264 + $0xc8] sm:$0x1]
        %v327 = vld [vmem:[%s264 + $0xcc] sm:$0xf]
        %v328 = vld [vmem:[%s264 + $0xd0] sm:$0xf]
        %v329 = vld [vmem:[%s264 + $0xd4] sm:$0x1]
        %v362 = vunpack.c.l.b16 %v276
        %v363 = vunpack.c.l.b16 %v277
        %v364 = vunpack.c.l.b16 %v279
        %v365 = vunpack.c.l.b16 %v280
        %v366 = vunpack.c.l.b16 %v282
        %v367 = vunpack.c.l.b16 %v283
        %v368 = vunpack.c.l.b16 %v285
        %v369 = vunpack.c.l.b16 %v286
        %v370 = vunpack.c.l.b16 %v288
        %v371 = vunpack.c.l.b16 %v289
        %v372 = vunpack.c.l.b16 %v291
        %v373 = vunpack.c.l.b16 %v292
        %v374 = vunpack.c.l.b16 %v294
        %v375 = vunpack.c.l.b16 %v295
        %v376 = vunpack.c.l.b16 %v297
        %v377 = vunpack.c.l.b16 %v298
        %v378 = vunpack.c.l.b16 %v300
        %v379 = vunpack.c.l.b16 %v301
        %v380 = vunpack.c.l.b16 %v303
        %v381 = vunpack.c.l.b16 %v304
        %v382 = vunpack.c.l.b16 %v306
        %v383 = vunpack.c.l.b16 %v307
        %v384 = vunpack.c.l.b16 %v309
        %v385 = vunpack.c.l.b16 %v310
        %v386 = vunpack.c.l.b16 %v312
        %v387 = vunpack.c.l.b16 %v313
        %v388 = vunpack.c.l.b16 %v315
        %v389 = vunpack.c.l.b16 %v316
        %v390 = vunpack.c.l.b16 %v318
        %v391 = vunpack.c.l.b16 %v319
        %v392 = vunpack.c.l.b16 %v321
        %v393 = vunpack.c.l.b16 %v322
        %v394 = vpack.c.b16 %v363, %v362
        %v395 = vpack.c.b16 %v365, %v364
        %v396 = vpack.c.b16 %v367, %v366
        %v397 = vpack.c.b16 %v369, %v368
        %v398 = vpack.c.b16 %v371, %v370
        %v399 = vpack.c.b16 %v373, %v372
        %v400 = vpack.c.b16 %v375, %v374
        %v401 = vpack.c.b16 %v377, %v376
        %v402 = vpack.c.b16 %v379, %v378
        %v403 = vpack.c.b16 %v381, %v380
        %v404 = vpack.c.b16 %v383, %v382
        %v405 = vpack.c.b16 %v385, %v384
        %v406 = vpack.c.b16 %v387, %v386
        %v407 = vpack.c.b16 %v389, %v388
        %v408 = vpack.c.b16 %v391, %v390
        %v409 = vpack.c.b16 %v393, %v392
        %vm426 = vcmask 31744
        %427 = vst.msk [vmem:[#allocation2] sm:$0xff] %vm426, %v394
        %428 = vst.msk [vmem:[#allocation2 + $0x8] sm:$0xff] %vm426, %v395
        %429 = vst.msk [vmem:[#allocation2 + $0x10] sm:$0xff] %vm426, %v396
        %430 = vst.msk [vmem:[#allocation2 + $0x18] sm:$0xff] %vm426, %v397
        %431 = vst.msk [vmem:[#allocation2 + $0x20] sm:$0xff] %vm426, %v398
        %432 = vst.msk [vmem:[#allocation2 + $0x28] sm:$0xff] %vm426, %v399
        %433 = vst.msk [vmem:[#allocation2 + $0x30] sm:$0xff] %vm426, %v400
        %434 = vst.msk [vmem:[#allocation2 + $0x38] sm:$0xff] %vm426, %v401
        %435 = vst.msk [vmem:[#allocation2 + $0x40] sm:$0xff] %vm426, %v402
        %436 = vst.msk [vmem:[#allocation2 + $0x48] sm:$0xff] %vm426, %v403
        %437 = vst.msk [vmem:[#allocation2 + $0x50] sm:$0xff] %vm426, %v404
        %438 = vst.msk [vmem:[#allocation2 + $0x58] sm:$0xff] %vm426, %v405
        %439 = vst.msk [vmem:[#allocation2 + $0x60] sm:$0xff] %vm426, %v406
        %440 = vst.msk [vmem:[#allocation2 + $0x68] sm:$0xff] %vm426, %v407
        %441 = vst.msk [vmem:[#allocation2 + $0x70] sm:$0xff] %vm426, %v408
        %442 = vst.msk [vmem:[#allocation2 + $0x78] sm:$0xff] %vm426, %v409
        %v459 = vunpack.c.l.b16 %v278
        %v460 = vunpack.c.l.b16 %v281
        %v461 = vunpack.c.l.b16 %v284
        %v462 = vunpack.c.l.b16 %v287
        %v463 = vunpack.c.l.b16 %v290
        %v464 = vunpack.c.l.b16 %v293
        %v465 = vunpack.c.l.b16 %v296
        %v466 = vunpack.c.l.b16 %v299
        %v467 = vunpack.c.l.b16 %v302
        %v468 = vunpack.c.l.b16 %v305
        %v469 = vunpack.c.l.b16 %v308
        %v470 = vunpack.c.l.b16 %v311
        %v471 = vunpack.c.l.b16 %v314
        %v472 = vunpack.c.l.b16 %v317
        %v473 = vunpack.c.l.b16 %v320
        %v474 = vunpack.c.l.b16 %v323
        %v475 = vpack.c.b16 %v459, %v459
        %v476 = vpack.c.b16 %v460, %v460
        %v477 = vpack.c.b16 %v461, %v461
        %v478 = vpack.c.b16 %v462, %v462
        %v479 = vpack.c.b16 %v463, %v463
        %v480 = vpack.c.b16 %v464, %v464
        %v481 = vpack.c.b16 %v465, %v465
        %v482 = vpack.c.b16 %v466, %v466
        %v483 = vpack.c.b16 %v467, %v467
        %v484 = vpack.c.b16 %v468, %v468
        %v485 = vpack.c.b16 %v469, %v469
        %v486 = vpack.c.b16 %v470, %v470
        %v487 = vpack.c.b16 %v471, %v471
        %v488 = vpack.c.b16 %v472, %v472
        %v489 = vpack.c.b16 %v473, %v473
        %v490 = vpack.c.b16 %v474, %v474
        %vm491 = vsmask.f32 7424
        %v493 = vshrl.u32 %v394, 16
        %v495 = vshll.u32 %v394, 16
        %v497 = vrot.slane %v495, 1
        %v498 = vor.u32 %v493, %v497
        %v500 = vshll.u32 %v475, 16
        %v502 = vrot.slane %v500, 1
        %v503 = vsel %vm491, %v498, %v502
        %v505 = vshrl.u32 %v395, 16
        %v507 = vshll.u32 %v395, 16
        %v509 = vrot.slane %v507, 1
        %v510 = vor.u32 %v505, %v509
        %v512 = vshll.u32 %v476, 16
        %v514 = vrot.slane %v512, 1
        %v515 = vsel %vm491, %v510, %v514
        %v517 = vshrl.u32 %v396, 16
        %v519 = vshll.u32 %v396, 16
        %v521 = vrot.slane %v519, 1
        %v522 = vor.u32 %v517, %v521
        %v524 = vshll.u32 %v477, 16
        %v526 = vrot.slane %v524, 1
        %v527 = vsel %vm491, %v522, %v526
        %v529 = vshrl.u32 %v397, 16
        %v531 = vshll.u32 %v397, 16
        %v533 = vrot.slane %v531, 1
        %v534 = vor.u32 %v529, %v533
        %v536 = vshll.u32 %v478, 16
        %v538 = vrot.slane %v536, 1
        %v539 = vsel %vm491, %v534, %v538
        %v541 = vshrl.u32 %v398, 16
        %v543 = vshll.u32 %v398, 16
        %v545 = vrot.slane %v543, 1
        %v546 = vor.u32 %v541, %v545
        %v548 = vshll.u32 %v479, 16
        %v550 = vrot.slane %v548, 1
        %v551 = vsel %vm491, %v546, %v550
        %v553 = vshrl.u32 %v399, 16
        %v555 = vshll.u32 %v399, 16
        %v557 = vrot.slane %v555, 1
        %v558 = vor.u32 %v553, %v557
        %v560 = vshll.u32 %v480, 16
        %v562 = vrot.slane %v560, 1
        %v563 = vsel %vm491, %v558, %v562
        %v565 = vshrl.u32 %v400, 16
        %v567 = vshll.u32 %v400, 16
        %v569 = vrot.slane %v567, 1
        %v570 = vor.u32 %v565, %v569
        %v572 = vshll.u32 %v481, 16
        %v574 = vrot.slane %v572, 1
        %v575 = vsel %vm491, %v570, %v574
        %v577 = vshrl.u32 %v401, 16
        %v579 = vshll.u32 %v401, 16
        %v581 = vrot.slane %v579, 1
        %v582 = vor.u32 %v577, %v581
        %v584 = vshll.u32 %v482, 16
        %v586 = vrot.slane %v584, 1
        %v587 = vsel %vm491, %v582, %v586
        %v589 = vshrl.u32 %v402, 16
        %v591 = vshll.u32 %v402, 16
        %v593 = vrot.slane %v591, 1
        %v594 = vor.u32 %v589, %v593
        %v596 = vshll.u32 %v483, 16
        %v598 = vrot.slane %v596, 1
        %v599 = vsel %vm491, %v594, %v598
        %v601 = vshrl.u32 %v403, 16
        %v603 = vshll.u32 %v403, 16
        %v605 = vrot.slane %v603, 1
        %v606 = vor.u32 %v601, %v605
        %v608 = vshll.u32 %v484, 16
        %v610 = vrot.slane %v608, 1
        %v611 = vsel %vm491, %v606, %v610
        %v613 = vshrl.u32 %v404, 16
        %v615 = vshll.u32 %v404, 16
        %v617 = vrot.slane %v615, 1
        %v618 = vor.u32 %v613, %v617
        %v620 = vshll.u32 %v485, 16
        %v622 = vrot.slane %v620, 1
        %v623 = vsel %vm491, %v618, %v622
        %v625 = vshrl.u32 %v405, 16
        %v627 = vshll.u32 %v405, 16
        %v629 = vrot.slane %v627, 1
        %v630 = vor.u32 %v625, %v629
        %v632 = vshll.u32 %v486, 16
        %v634 = vrot.slane %v632, 1
        %v635 = vsel %vm491, %v630, %v634
        %v637 = vshrl.u32 %v406, 16
        %v639 = vshll.u32 %v406, 16
        %v641 = vrot.slane %v639, 1
        %v642 = vor.u32 %v637, %v641
        %v644 = vshll.u32 %v487, 16
        %v646 = vrot.slane %v644, 1
        %v647 = vsel %vm491, %v642, %v646
        %v649 = vshrl.u32 %v407, 16
        %v651 = vshll.u32 %v407, 16
        %v653 = vrot.slane %v651, 1
        %v654 = vor.u32 %v649, %v653
        %v656 = vshll.u32 %v488, 16
        %v658 = vrot.slane %v656, 1
        %v659 = vsel %vm491, %v654, %v658
        %v661 = vshrl.u32 %v408, 16
        %v663 = vshll.u32 %v408, 16
        %v665 = vrot.slane %v663, 1
        %v666 = vor.u32 %v661, %v665
        %v668 = vshll.u32 %v489, 16
        %v670 = vrot.slane %v668, 1
        %v671 = vsel %vm491, %v666, %v670
        %v673 = vshrl.u32 %v409, 16
        %v675 = vshll.u32 %v409, 16
        %v677 = vrot.slane %v675, 1
        %v678 = vor.u32 %v673, %v677
        %v680 = vshll.u32 %v490, 16
        %v682 = vrot.slane %v680, 1
        %v683 = vsel %vm491, %v678, %v682
        %684 = vrot.lane.b32.xlu0 %v503, 4
        %v685 = vpop.permute.xlu0 %684
        %686 = vrot.lane.b32.xlu0 %v515, 4
        %v687 = vpop.permute.xlu0 %686
        %688 = vrot.lane.b32.xlu0 %v527, 4
        %v689 = vpop.permute.xlu0 %688
        %690 = vrot.lane.b32.xlu0 %v539, 4
        %v691 = vpop.permute.xlu0 %690
        %692 = vrot.lane.b32.xlu0 %v551, 4
        %v693 = vpop.permute.xlu0 %692
        %694 = vrot.lane.b32.xlu0 %v563, 4
        %v695 = vpop.permute.xlu0 %694
        %696 = vrot.lane.b32.xlu0 %v575, 4
        %v697 = vpop.permute.xlu0 %696
        %698 = vrot.lane.b32.xlu0 %v587, 4
        %v699 = vpop.permute.xlu0 %698
        %700 = vrot.lane.b32.xlu0 %v599, 4
        %v701 = vpop.permute.xlu0 %700
        %702 = vrot.lane.b32.xlu0 %v611, 4
        %v703 = vpop.permute.xlu0 %702
        %704 = vrot.lane.b32.xlu0 %v623, 4
        %v705 = vpop.permute.xlu0 %704
        %706 = vrot.lane.b32.xlu0 %v635, 4
        %v707 = vpop.permute.xlu0 %706
        %708 = vrot.lane.b32.xlu0 %v647, 4
        %v709 = vpop.permute.xlu0 %708
        %710 = vrot.lane.b32.xlu0 %v659, 4
        %v711 = vpop.permute.xlu0 %710
        %712 = vrot.lane.b32.xlu0 %v671, 4
        %v713 = vpop.permute.xlu0 %712
        %714 = vrot.lane.b32.xlu0 %v683, 4
        %v715 = vpop.permute.xlu0 %714
        %vm732 = vcmask 64544
        %733 = vst.msk [vmem:[#allocation2] sm:$0xff] %vm732, %v685
        %734 = vst.msk [vmem:[#allocation2 + $0x8] sm:$0xff] %vm732, %v687
        %735 = vst.msk [vmem:[#allocation2 + $0x10] sm:$0xff] %vm732, %v689
        %736 = vst.msk [vmem:[#allocation2 + $0x18] sm:$0xff] %vm732, %v691
        %737 = vst.msk [vmem:[#allocation2 + $0x20] sm:$0xff] %vm732, %v693
        %738 = vst.msk [vmem:[#allocation2 + $0x28] sm:$0xff] %vm732, %v695
        %739 = vst.msk [vmem:[#allocation2 + $0x30] sm:$0xff] %vm732, %v697
        %740 = vst.msk [vmem:[#allocation2 + $0x38] sm:$0xff] %vm732, %v699
        %741 = vst.msk [vmem:[#allocation2 + $0x40] sm:$0xff] %vm732, %v701
        %742 = vst.msk [vmem:[#allocation2 + $0x48] sm:$0xff] %vm732, %v703
        %743 = vst.msk [vmem:[#allocation2 + $0x50] sm:$0xff] %vm732, %v705
        %744 = vst.msk [vmem:[#allocation2 + $0x58] sm:$0xff] %vm732, %v707
        %745 = vst.msk [vmem:[#allocation2 + $0x60] sm:$0xff] %vm732, %v709
        %746 = vst.msk [vmem:[#allocation2 + $0x68] sm:$0xff] %vm732, %v711
        %747 = vst.msk [vmem:[#allocation2 + $0x70] sm:$0xff] %vm732, %v713
        %748 = vst.msk [vmem:[#allocation2 + $0x78] sm:$0xff] %vm732, %v715
        %vm749 = vcmask 1046528
        %v750 = vrot.slane %v394, 1
        %v751 = vrot.slane %v475, 1
        %v752 = vsel %vm749, %v750, %v751
        %v753 = vrot.slane %v395, 1
        %v754 = vrot.slane %v476, 1
        %v755 = vsel %vm749, %v753, %v754
        %v756 = vrot.slane %v396, 1
        %v757 = vrot.slane %v477, 1
        %v758 = vsel %vm749, %v756, %v757
        %v759 = vrot.slane %v397, 1
        %v760 = vrot.slane %v478, 1
        %v761 = vsel %vm749, %v759, %v760
        %v762 = vrot.slane %v398, 1
        %v763 = vrot.slane %v479, 1
        %v764 = vsel %vm749, %v762, %v763
        %v765 = vrot.slane %v399, 1
        %v766 = vrot.slane %v480, 1
        %v767 = vsel %vm749, %v765, %v766
        %v768 = vrot.slane %v400, 1
        %v769 = vrot.slane %v481, 1
        %v770 = vsel %vm749, %v768, %v769
        %v771 = vrot.slane %v401, 1
        %v772 = vrot.slane %v482, 1
        %v773 = vsel %vm749, %v771, %v772
        %v774 = vrot.slane %v402, 1
        %v775 = vrot.slane %v483, 1
        %v776 = vsel %vm749, %v774, %v775
        %v777 = vrot.slane %v403, 1
        %v778 = vrot.slane %v484, 1
        %v779 = vsel %vm749, %v777, %v778
        %v780 = vrot.slane %v404, 1
        %v781 = vrot.slane %v485, 1
        %v782 = vsel %vm749, %v780, %v781
        %v783 = vrot.slane %v405, 1
        %v784 = vrot.slane %v486, 1
        %v785 = vsel %vm749, %v783, %v784
        %v786 = vrot.slane %v406, 1
        %v787 = vrot.slane %v487, 1
        %v788 = vsel %vm749, %v786, %v787
        %v789 = vrot.slane %v407, 1
        %v790 = vrot.slane %v488, 1
        %v791 = vsel %vm749, %v789, %v790
        %v792 = vrot.slane %v408, 1
        %v793 = vrot.slane %v489, 1
        %v794 = vsel %vm749, %v792, %v793
        %v795 = vrot.slane %v409, 1
        %v796 = vrot.slane %v490, 1
        %v797 = vsel %vm749, %v795, %v796
        %798 = vrot.lane.b32.xlu0 %v752, 8
        %v799 = vpop.permute.xlu0 %798
        %800 = vrot.lane.b32.xlu0 %v755, 8
        %v801 = vpop.permute.xlu0 %800
        %802 = vrot.lane.b32.xlu0 %v758, 8
        %v803 = vpop.permute.xlu0 %802
        %804 = vrot.lane.b32.xlu0 %v761, 8
        %v805 = vpop.permute.xlu0 %804
        %806 = vrot.lane.b32.xlu0 %v764, 8
        %v807 = vpop.permute.xlu0 %806
        %808 = vrot.lane.b32.xlu0 %v767, 8
        %v809 = vpop.permute.xlu0 %808
        %810 = vrot.lane.b32.xlu0 %v770, 8
        %v811 = vpop.permute.xlu0 %810
        %812 = vrot.lane.b32.xlu0 %v773, 8
        %v813 = vpop.permute.xlu0 %812
        %814 = vrot.lane.b32.xlu0 %v776, 8
        %v815 = vpop.permute.xlu0 %814
        %816 = vrot.lane.b32.xlu0 %v779, 8
        %v817 = vpop.permute.xlu0 %816
        %818 = vrot.lane.b32.xlu0 %v782, 8
        %v819 = vpop.permute.xlu0 %818
        %820 = vrot.lane.b32.xlu0 %v785, 8
        %v821 = vpop.permute.xlu0 %820
        %822 = vrot.lane.b32.xlu0 %v788, 8
        %v823 = vpop.permute.xlu0 %822
        %824 = vrot.lane.b32.xlu0 %v791, 8
        %v825 = vpop.permute.xlu0 %824
        %826 = vrot.lane.b32.xlu0 %v794, 8
        %v827 = vpop.permute.xlu0 %826
        %828 = vrot.lane.b32.xlu0 %v797, 8
        %v829 = vpop.permute.xlu0 %828
        %vm846 = vcmask 97344
        %847 = vst.msk [vmem:[#allocation2] sm:$0xff] %vm846, %v799
        %848 = vst.msk [vmem:[#allocation2 + $0x8] sm:$0xff] %vm846, %v801
        %849 = vst.msk [vmem:[#allocation2 + $0x10] sm:$0xff] %vm846, %v803
        %850 = vst.msk [vmem:[#allocation2 + $0x18] sm:$0xff] %vm846, %v805
        %851 = vst.msk [vmem:[#allocation2 + $0x20] sm:$0xff] %vm846, %v807
        %852 = vst.msk [vmem:[#allocation2 + $0x28] sm:$0xff] %vm846, %v809
        %853 = vst.msk [vmem:[#allocation2 + $0x30] sm:$0xff] %vm846, %v811
        %854 = vst.msk [vmem:[#allocation2 + $0x38] sm:$0xff] %vm846, %v813
        %855 = vst.msk [vmem:[#allocation2 + $0x40] sm:$0xff] %vm846, %v815
        %856 = vst.msk [vmem:[#allocation2 + $0x48] sm:$0xff] %vm846, %v817
        %857 = vst.msk [vmem:[#allocation2 + $0x50] sm:$0xff] %vm846, %v819
        %858 = vst.msk [vmem:[#allocation2 + $0x58] sm:$0xff] %vm846, %v821
        %859 = vst.msk [vmem:[#allocation2 + $0x60] sm:$0xff] %vm846, %v823
        %860 = vst.msk [vmem:[#allocation2 + $0x68] sm:$0xff] %vm846, %v825
        %861 = vst.msk [vmem:[#allocation2 + $0x70] sm:$0xff] %vm846, %v827
        %862 = vst.msk [vmem:[#allocation2 + $0x78] sm:$0xff] %vm846, %v829
        %v865 = vunpack.c.l.b16 %v324
        %v866 = vunpack.c.l.b16 %v325
        %v867 = vpack.c.b16 %v866, %v865
        %868 = vrot.lane.b32.xlu0 %v395, 12
        %v869 = vpop.permute.xlu0 %868
        %870 = vrot.lane.b32.xlu0 %v396, 12
        %v871 = vpop.permute.xlu0 %870
        %872 = vrot.lane.b32.xlu0 %v397, 12
        %v873 = vpop.permute.xlu0 %872
        %874 = vrot.lane.b32.xlu0 %v398, 12
        %v875 = vpop.permute.xlu0 %874
        %876 = vrot.lane.b32.xlu0 %v399, 12
        %v877 = vpop.permute.xlu0 %876
        %878 = vrot.lane.b32.xlu0 %v400, 12
        %v879 = vpop.permute.xlu0 %878
        %880 = vrot.lane.b32.xlu0 %v401, 12
        %v881 = vpop.permute.xlu0 %880
        %882 = vrot.lane.b32.xlu0 %v402, 12
        %v883 = vpop.permute.xlu0 %882
        %884 = vrot.lane.b32.xlu0 %v403, 12
        %v885 = vpop.permute.xlu0 %884
        %886 = vrot.lane.b32.xlu0 %v404, 12
        %v887 = vpop.permute.xlu0 %886
        %888 = vrot.lane.b32.xlu0 %v405, 12
        %v889 = vpop.permute.xlu0 %888
        %890 = vrot.lane.b32.xlu0 %v406, 12
        %v891 = vpop.permute.xlu0 %890
        %892 = vrot.lane.b32.xlu0 %v407, 12
        %v893 = vpop.permute.xlu0 %892
        %894 = vrot.lane.b32.xlu0 %v408, 12
        %v895 = vpop.permute.xlu0 %894
        %896 = vrot.lane.b32.xlu0 %v409, 12
        %v897 = vpop.permute.xlu0 %896
        %898 = vrot.lane.b32.xlu0 %v867, 12
        %v899 = vpop.permute.xlu0 %898
        %vm916 = vcmask 130144
        %917 = vst.msk [vmem:[#allocation2] sm:$0xff] %vm916, %v869
        %918 = vst.msk [vmem:[#allocation2 + $0x8] sm:$0xff] %vm916, %v871
        %919 = vst.msk [vmem:[#allocation2 + $0x10] sm:$0xff] %vm916, %v873
        %920 = vst.msk [vmem:[#allocation2 + $0x18] sm:$0xff] %vm916, %v875
        %921 = vst.msk [vmem:[#allocation2 + $0x20] sm:$0xff] %vm916, %v877
        %922 = vst.msk [vmem:[#allocation2 + $0x28] sm:$0xff] %vm916, %v879
        %923 = vst.msk [vmem:[#allocation2 + $0x30] sm:$0xff] %vm916, %v881
        %924 = vst.msk [vmem:[#allocation2 + $0x38] sm:$0xff] %vm916, %v883
        %925 = vst.msk [vmem:[#allocation2 + $0x40] sm:$0xff] %vm916, %v885
        %926 = vst.msk [vmem:[#allocation2 + $0x48] sm:$0xff] %vm916, %v887
        %927 = vst.msk [vmem:[#allocation2 + $0x50] sm:$0xff] %vm916, %v889
        %928 = vst.msk [vmem:[#allocation2 + $0x58] sm:$0xff] %vm916, %v891
        %929 = vst.msk [vmem:[#allocation2 + $0x60] sm:$0xff] %vm916, %v893
        %930 = vst.msk [vmem:[#allocation2 + $0x68] sm:$0xff] %vm916, %v895
        %931 = vst.msk [vmem:[#allocation2 + $0x70] sm:$0xff] %vm916, %v897
        %932 = vst.msk [vmem:[#allocation2 + $0x78] sm:$0xff] %vm916, %v899
        %v934 = vunpack.c.l.b16 %v326
        %v935 = vpack.c.b16 %v934, %v934
        %v937 = vshrl.u32 %v867, 16
        %v939 = vshll.u32 %v867, 16
        %v941 = vrot.slane %v939, 1
        %v942 = vor.u32 %v937, %v941
        %v944 = vshll.u32 %v935, 16
        %v946 = vrot.slane %v944, 1
        %v947 = vsel %vm491, %v942, %v946
        %948 = vrot.lane.b32.xlu0 %v515, 16
        %v949 = vpop.permute.xlu0 %948
        %950 = vrot.lane.b32.xlu0 %v527, 16
        %v951 = vpop.permute.xlu0 %950
        %952 = vrot.lane.b32.xlu0 %v539, 16
        %v953 = vpop.permute.xlu0 %952
        %954 = vrot.lane.b32.xlu0 %v551, 16
        %v955 = vpop.permute.xlu0 %954
        %956 = vrot.lane.b32.xlu0 %v563, 16
        %v957 = vpop.permute.xlu0 %956
        %958 = vrot.lane.b32.xlu0 %v575, 16
        %v959 = vpop.permute.xlu0 %958
        %960 = vrot.lane.b32.xlu0 %v587, 16
        %v961 = vpop.permute.xlu0 %960
        %962 = vrot.lane.b32.xlu0 %v599, 16
        %v963 = vpop.permute.xlu0 %962
        %964 = vrot.lane.b32.xlu0 %v611, 16
        %v965 = vpop.permute.xlu0 %964
        %966 = vrot.lane.b32.xlu0 %v623, 16
        %v967 = vpop.permute.xlu0 %966
        %968 = vrot.lane.b32.xlu0 %v635, 16
        %v969 = vpop.permute.xlu0 %968
        %970 = vrot.lane.b32.xlu0 %v647, 16
        %v971 = vpop.permute.xlu0 %970
        %972 = vrot.lane.b32.xlu0 %v659, 16
        %v973 = vpop.permute.xlu0 %972
        %974 = vrot.lane.b32.xlu0 %v671, 16
        %v975 = vpop.permute.xlu0 %974
        %976 = vrot.lane.b32.xlu0 %v683, 16
        %v977 = vpop.permute.xlu0 %976
        %978 = vrot.lane.b32.xlu0 %v947, 16
        %v979 = vpop.permute.xlu0 %978
        %vm996 = vcmask 162944
        %997 = vst.msk [vmem:[#allocation2] sm:$0xff] %vm996, %v949
        %998 = vst.msk [vmem:[#allocation2 + $0x8] sm:$0xff] %vm996, %v951
        %999 = vst.msk [vmem:[#allocation2 + $0x10] sm:$0xff] %vm996, %v953
        %1000 = vst.msk [vmem:[#allocation2 + $0x18] sm:$0xff] %vm996, %v955
        %1001 = vst.msk [vmem:[#allocation2 + $0x20] sm:$0xff] %vm996, %v957
        %1002 = vst.msk [vmem:[#allocation2 + $0x28] sm:$0xff] %vm996, %v959
        %1003 = vst.msk [vmem:[#allocation2 + $0x30] sm:$0xff] %vm996, %v961
        %1004 = vst.msk [vmem:[#allocation2 + $0x38] sm:$0xff] %vm996, %v963
        %1005 = vst.msk [vmem:[#allocation2 + $0x40] sm:$0xff] %vm996, %v965
        %1006 = vst.msk [vmem:[#allocation2 + $0x48] sm:$0xff] %vm996, %v967
        %1007 = vst.msk [vmem:[#allocation2 + $0x50] sm:$0xff] %vm996, %v969
        %1008 = vst.msk [vmem:[#allocation2 + $0x58] sm:$0xff] %vm996, %v971
        %1009 = vst.msk [vmem:[#allocation2 + $0x60] sm:$0xff] %vm996, %v973
        %1010 = vst.msk [vmem:[#allocation2 + $0x68] sm:$0xff] %vm996, %v975
        %1011 = vst.msk [vmem:[#allocation2 + $0x70] sm:$0xff] %vm996, %v977
        %1012 = vst.msk [vmem:[#allocation2 + $0x78] sm:$0xff] %vm996, %v979
        %v1013 = vrot.slane %v867, 1
        %v1014 = vrot.slane %v935, 1
        %v1015 = vsel %vm749, %v1013, %v1014
        %1016 = vrot.lane.b32.xlu0 %v755, 20
        %v1017 = vpop.permute.xlu0 %1016
        %1018 = vrot.lane.b32.xlu0 %v758, 20
        %v1019 = vpop.permute.xlu0 %1018
        %1020 = vrot.lane.b32.xlu0 %v761, 20
        %v1021 = vpop.permute.xlu0 %1020
        %1022 = vrot.lane.b32.xlu0 %v764, 20
        %v1023 = vpop.permute.xlu0 %1022
        %1024 = vrot.lane.b32.xlu0 %v767, 20
        %v1025 = vpop.permute.xlu0 %1024
        %1026 = vrot.lane.b32.xlu0 %v770, 20
        %v1027 = vpop.permute.xlu0 %1026
        %1028 = vrot.lane.b32.xlu0 %v773, 20
        %v1029 = vpop.permute.xlu0 %1028
        %1030 = vrot.lane.b32.xlu0 %v776, 20
        %v1031 = vpop.permute.xlu0 %1030
        %1032 = vrot.lane.b32.xlu0 %v779, 20
        %v1033 = vpop.permute.xlu0 %1032
        %1034 = vrot.lane.b32.xlu0 %v782, 20
        %v1035 = vpop.permute.xlu0 %1034
        %1036 = vrot.lane.b32.xlu0 %v785, 20
        %v1037 = vpop.permute.xlu0 %1036
        %1038 = vrot.lane.b32.xlu0 %v788, 20
        %v1039 = vpop.permute.xlu0 %1038
        %1040 = vrot.lane.b32.xlu0 %v791, 20
        %v1041 = vpop.permute.xlu0 %1040
        %1042 = vrot.lane.b32.xlu0 %v794, 20
        %v1043 = vpop.permute.xlu0 %1042
        %1044 = vrot.lane.b32.xlu0 %v797, 20
        %v1045 = vpop.permute.xlu0 %1044
        %1046 = vrot.lane.b32.xlu0 %v1015, 20
        %v1047 = vpop.permute.xlu0 %1046
        %vm1064 = vcmask 195744
        %1065 = vst.msk [vmem:[#allocation2] sm:$0xff] %vm1064, %v1017
        %1066 = vst.msk [vmem:[#allocation2 + $0x8] sm:$0xff] %vm1064, %v1019
        %1067 = vst.msk [vmem:[#allocation2 + $0x10] sm:$0xff] %vm1064, %v1021
        %1068 = vst.msk [vmem:[#allocation2 + $0x18] sm:$0xff] %vm1064, %v1023
        %1069 = vst.msk [vmem:[#allocation2 + $0x20] sm:$0xff] %vm1064, %v1025
        %1070 = vst.msk [vmem:[#allocation2 + $0x28] sm:$0xff] %vm1064, %v1027
        %1071 = vst.msk [vmem:[#allocation2 + $0x30] sm:$0xff] %vm1064, %v1029
        %1072 = vst.msk [vmem:[#allocation2 + $0x38] sm:$0xff] %vm1064, %v1031
        %1073 = vst.msk [vmem:[#allocation2 + $0x40] sm:$0xff] %vm1064, %v1033
        %1074 = vst.msk [vmem:[#allocation2 + $0x48] sm:$0xff] %vm1064, %v1035
        %1075 = vst.msk [vmem:[#allocation2 + $0x50] sm:$0xff] %vm1064, %v1037
        %1076 = vst.msk [vmem:[#allocation2 + $0x58] sm:$0xff] %vm1064, %v1039
        %1077 = vst.msk [vmem:[#allocation2 + $0x60] sm:$0xff] %vm1064, %v1041
        %1078 = vst.msk [vmem:[#allocation2 + $0x68] sm:$0xff] %vm1064, %v1043
        %1079 = vst.msk [vmem:[#allocation2 + $0x70] sm:$0xff] %vm1064, %v1045
        %1080 = vst.msk [vmem:[#allocation2 + $0x78] sm:$0xff] %vm1064, %v1047
        %v1083 = vunpack.c.l.b16 %v327
        %v1084 = vunpack.c.l.b16 %v328
        %v1085 = vpack.c.b16 %v1084, %v1083
        %1086 = vrot.lane.b32.xlu0 %v396, 24
        %v1087 = vpop.permute.xlu0 %1086
        %1088 = vrot.lane.b32.xlu0 %v397, 24
        %v1089 = vpop.permute.xlu0 %1088
        %1090 = vrot.lane.b32.xlu0 %v398, 24
        %v1091 = vpop.permute.xlu0 %1090
        %1092 = vrot.lane.b32.xlu0 %v399, 24
        %v1093 = vpop.permute.xlu0 %1092
        %1094 = vrot.lane.b32.xlu0 %v400, 24
        %v1095 = vpop.permute.xlu0 %1094
        %1096 = vrot.lane.b32.xlu0 %v401, 24
        %v1097 = vpop.permute.xlu0 %1096
        %1098 = vrot.lane.b32.xlu0 %v402, 24
        %v1099 = vpop.permute.xlu0 %1098
        %1100 = vrot.lane.b32.xlu0 %v403, 24
        %v1101 = vpop.permute.xlu0 %1100
        %1102 = vrot.lane.b32.xlu0 %v404, 24
        %v1103 = vpop.permute.xlu0 %1102
        %1104 = vrot.lane.b32.xlu0 %v405, 24
        %v1105 = vpop.permute.xlu0 %1104
        %1106 = vrot.lane.b32.xlu0 %v406, 24
        %v1107 = vpop.permute.xlu0 %1106
        %1108 = vrot.lane.b32.xlu0 %v407, 24
        %v1109 = vpop.permute.xlu0 %1108
        %1110 = vrot.lane.b32.xlu0 %v408, 24
        %v1111 = vpop.permute.xlu0 %1110
        %1112 = vrot.lane.b32.xlu0 %v409, 24
        %v1113 = vpop.permute.xlu0 %1112
        %1114 = vrot.lane.b32.xlu0 %v867, 24
        %v1115 = vpop.permute.xlu0 %1114
        %1116 = vrot.lane.b32.xlu0 %v1085, 24
        %v1117 = vpop.permute.xlu0 %1116
        %vm1134 = vcmask 228544
        %1135 = vst.msk [vmem:[#allocation2] sm:$0xff] %vm1134, %v1087
        %1136 = vst.msk [vmem:[#allocation2 + $0x8] sm:$0xff] %vm1134, %v1089
        %1137 = vst.msk [vmem:[#allocation2 + $0x10] sm:$0xff] %vm1134, %v1091
        %1138 = vst.msk [vmem:[#allocation2 + $0x18] sm:$0xff] %vm1134, %v1093
        %1139 = vst.msk [vmem:[#allocation2 + $0x20] sm:$0xff] %vm1134, %v1095
        %1140 = vst.msk [vmem:[#allocation2 + $0x28] sm:$0xff] %vm1134, %v1097
        %1141 = vst.msk [vmem:[#allocation2 + $0x30] sm:$0xff] %vm1134, %v1099
        %1142 = vst.msk [vmem:[#allocation2 + $0x38] sm:$0xff] %vm1134, %v1101
        %1143 = vst.msk [vmem:[#allocation2 + $0x40] sm:$0xff] %vm1134, %v1103
        %1144 = vst.msk [vmem:[#allocation2 + $0x48] sm:$0xff] %vm1134, %v1105
        %1145 = vst.msk [vmem:[#allocation2 + $0x50] sm:$0xff] %vm1134, %v1107
        %1146 = vst.msk [vmem:[#allocation2 + $0x58] sm:$0xff] %vm1134, %v1109
        %1147 = vst.msk [vmem:[#allocation2 + $0x60] sm:$0xff] %vm1134, %v1111
        %1148 = vst.msk [vmem:[#allocation2 + $0x68] sm:$0xff] %vm1134, %v1113
        %1149 = vst.msk [vmem:[#allocation2 + $0x70] sm:$0xff] %vm1134, %v1115
        %1150 = vst.msk [vmem:[#allocation2 + $0x78] sm:$0xff] %vm1134, %v1117
        %v1152 = vunpack.c.l.b16 %v329
        %v1153 = vpack.c.b16 %v1152, %v1152
        %v1155 = vshrl.u32 %v1085, 16
        %v1157 = vshll.u32 %v1085, 16
        %v1159 = vrot.slane %v1157, 1
        %v1160 = vor.u32 %v1155, %v1159
        %v1162 = vshll.u32 %v1153, 16
        %v1164 = vrot.slane %v1162, 1
        %v1165 = vsel %vm491, %v1160, %v1164
        %1166 = vrot.lane.b32.xlu0 %v527, 28
        %v1167 = vpop.permute.xlu0 %1166
        %1168 = vrot.lane.b32.xlu0 %v539, 28
        %v1169 = vpop.permute.xlu0 %1168
        %1170 = vrot.lane.b32.xlu0 %v551, 28
        %v1171 = vpop.permute.xlu0 %1170
        %1172 = vrot.lane.b32.xlu0 %v563, 28
        %v1173 = vpop.permute.xlu0 %1172
        %1174 = vrot.lane.b32.xlu0 %v575, 28
        %v1175 = vpop.permute.xlu0 %1174
        %1176 = vrot.lane.b32.xlu0 %v587, 28
        %v1177 = vpop.permute.xlu0 %1176
        %1178 = vrot.lane.b32.xlu0 %v599, 28
        %v1179 = vpop.permute.xlu0 %1178
        %1180 = vrot.lane.b32.xlu0 %v611, 28
        %v1181 = vpop.permute.xlu0 %1180
        %1182 = vrot.lane.b32.xlu0 %v623, 28
        %v1183 = vpop.permute.xlu0 %1182
        %1184 = vrot.lane.b32.xlu0 %v635, 28
        %v1185 = vpop.permute.xlu0 %1184
        %1186 = vrot.lane.b32.xlu0 %v647, 28
        %v1187 = vpop.permute.xlu0 %1186
        %1188 = vrot.lane.b32.xlu0 %v659, 28
        %v1189 = vpop.permute.xlu0 %1188
        %1190 = vrot.lane.b32.xlu0 %v671, 28
        %v1191 = vpop.permute.xlu0 %1190
        %1192 = vrot.lane.b32.xlu0 %v683, 28
        %v1193 = vpop.permute.xlu0 %1192
        %1194 = vrot.lane.b32.xlu0 %v947, 28
        %v1195 = vpop.permute.xlu0 %1194
        %1196 = vrot.lane.b32.xlu0 %v1165, 28
        %v1197 = vpop.permute.xlu0 %1196
        %vm1214 = vcmask 261344
        %1215 = vst.msk [vmem:[#allocation2] sm:$0xff] %vm1214, %v1167
        %1216 = vst.msk [vmem:[#allocation2 + $0x8] sm:$0xff] %vm1214, %v1169
        %1217 = vst.msk [vmem:[#allocation2 + $0x10] sm:$0xff] %vm1214, %v1171
        %1218 = vst.msk [vmem:[#allocation2 + $0x18] sm:$0xff] %vm1214, %v1173
        %1219 = vst.msk [vmem:[#allocation2 + $0x20] sm:$0xff] %vm1214, %v1175
        %1220 = vst.msk [vmem:[#allocation2 + $0x28] sm:$0xff] %vm1214, %v1177
        %1221 = vst.msk [vmem:[#allocation2 + $0x30] sm:$0xff] %vm1214, %v1179
        %1222 = vst.msk [vmem:[#allocation2 + $0x38] sm:$0xff] %vm1214, %v1181
        %1223 = vst.msk [vmem:[#allocation2 + $0x40] sm:$0xff] %vm1214, %v1183
        %1224 = vst.msk [vmem:[#allocation2 + $0x48] sm:$0xff] %vm1214, %v1185
        %1225 = vst.msk [vmem:[#allocation2 + $0x50] sm:$0xff] %vm1214, %v1187
        %1226 = vst.msk [vmem:[#allocation2 + $0x58] sm:$0xff] %vm1214, %v1189
        %1227 = vst.msk [vmem:[#allocation2 + $0x60] sm:$0xff] %vm1214, %v1191
        %1228 = vst.msk [vmem:[#allocation2 + $0x68] sm:$0xff] %vm1214, %v1193
        %1229 = vst.msk [vmem:[#allocation2 + $0x70] sm:$0xff] %vm1214, %v1195
        %1230 = vst.msk [vmem:[#allocation2 + $0x78] sm:$0xff] %vm1214, %v1197
        %v1231 = vrot.slane %v1085, 1
        %v1232 = vrot.slane %v1153, 1
        %v1233 = vsel %vm749, %v1231, %v1232
        %1234 = vrot.lane.b32.xlu0 %v758, 32
        %v1235 = vpop.permute.xlu0 %1234
        %1236 = vrot.lane.b32.xlu0 %v761, 32
        %v1237 = vpop.permute.xlu0 %1236
        %1238 = vrot.lane.b32.xlu0 %v764, 32
        %v1239 = vpop.permute.xlu0 %1238
        %1240 = vrot.lane.b32.xlu0 %v767, 32
        %v1241 = vpop.permute.xlu0 %1240
        %1242 = vrot.lane.b32.xlu0 %v770, 32
        %v1243 = vpop.permute.xlu0 %1242
        %1244 = vrot.lane.b32.xlu0 %v773, 32
        %v1245 = vpop.permute.xlu0 %1244
        %1246 = vrot.lane.b32.xlu0 %v776, 32
        %v1247 = vpop.permute.xlu0 %1246
        %1248 = vrot.lane.b32.xlu0 %v779, 32
        %v1249 = vpop.permute.xlu0 %1248
        %1250 = vrot.lane.b32.xlu0 %v782, 32
        %v1251 = vpop.permute.xlu0 %1250
        %1252 = vrot.lane.b32.xlu0 %v785, 32
        %v1253 = vpop.permute.xlu0 %1252
        %1254 = vrot.lane.b32.xlu0 %v788, 32
        %v1255 = vpop.permute.xlu0 %1254
        %1256 = vrot.lane.b32.xlu0 %v791, 32
        %v1257 = vpop.permute.xlu0 %1256
        %1258 = vrot.lane.b32.xlu0 %v794, 32
        %v1259 = vpop.permute.xlu0 %1258
        %1260 = vrot.lane.b32.xlu0 %v797, 32
        %v1261 = vpop.permute.xlu0 %1260
        %1262 = vrot.lane.b32.xlu0 %v1015, 32
        %v1263 = vpop.permute.xlu0 %1262
        %1264 = vrot.lane.b32.xlu0 %v1233, 32
        %v1265 = vpop.permute.xlu0 %1264
        %vm1282 = vcmask 294144
        %1283 = vst.msk [vmem:[#allocation2] sm:$0xff] %vm1282, %v1235
        %1284 = vst.msk [vmem:[#allocation2 + $0x8] sm:$0xff] %vm1282, %v1237
        %1285 = vst.msk [vmem:[#allocation2 + $0x10] sm:$0xff] %vm1282, %v1239
        %1286 = vst.msk [vmem:[#allocation2 + $0x18] sm:$0xff] %vm1282, %v1241
        %1287 = vst.msk [vmem:[#allocation2 + $0x20] sm:$0xff] %vm1282, %v1243
        %1288 = vst.msk [vmem:[#allocation2 + $0x28] sm:$0xff] %vm1282, %v1245
        %1289 = vst.msk [vmem:[#allocation2 + $0x30] sm:$0xff] %vm1282, %v1247
        %1290 = vst.msk [vmem:[#allocation2 + $0x38] sm:$0xff] %vm1282, %v1249
        %1291 = vst.msk [vmem:[#allocation2 + $0x40] sm:$0xff] %vm1282, %v1251
        %1292 = vst.msk [vmem:[#allocation2 + $0x48] sm:$0xff] %vm1282, %v1253
        %1293 = vst.msk [vmem:[#allocation2 + $0x50] sm:$0xff] %vm1282, %v1255
        %1294 = vst.msk [vmem:[#allocation2 + $0x58] sm:$0xff] %vm1282, %v1257
        %1295 = vst.msk [vmem:[#allocation2 + $0x60] sm:$0xff] %vm1282, %v1259
        %1296 = vst.msk [vmem:[#allocation2 + $0x68] sm:$0xff] %vm1282, %v1261
        %1297 = vst.msk [vmem:[#allocation2 + $0x70] sm:$0xff] %vm1282, %v1263
        %1298 = vst.msk [vmem:[#allocation2 + $0x78] sm:$0xff] %vm1282, %v1265
        %v1299 = vld [vmem:[#allocation2] sm:$0xff]
        %v1300 = vld [vmem:[#allocation2 + $0x8] sm:$0xff]
        %v1301 = vld [vmem:[#allocation2 + $0x10] sm:$0xff]
        %v1302 = vld [vmem:[#allocation2 + $0x18] sm:$0xff]
        %v1303 = vld [vmem:[#allocation2 + $0x20] sm:$0xff]
        %v1304 = vld [vmem:[#allocation2 + $0x28] sm:$0xff]
        %v1305 = vld [vmem:[#allocation2 + $0x30] sm:$0xff]
        %v1306 = vld [vmem:[#allocation2 + $0x38] sm:$0xff]
        %v1307 = vld [vmem:[#allocation2 + $0x40] sm:$0xff]
        %v1308 = vld [vmem:[#allocation2 + $0x48] sm:$0xff]
        %v1309 = vld [vmem:[#allocation2 + $0x50] sm:$0xff]
        %v1310 = vld [vmem:[#allocation2 + $0x58] sm:$0xff]
        %v1311 = vld [vmem:[#allocation2 + $0x60] sm:$0xff]
        %v1312 = vld [vmem:[#allocation2 + $0x68] sm:$0xff]
        %v1313 = vld [vmem:[#allocation2 + $0x70] sm:$0xff]
        %v1314 = vld [vmem:[#allocation2 + $0x78] sm:$0xff]
        %v1315 = vld [vmem:[%s1] sm:$0xf]
        %v1316 = vld [vmem:[%s1 + $0x4] sm:$0xf]
        %v1317 = vld [vmem:[%s1 + $0x8] sm:$0xf]
        %v1318 = vld [vmem:[%s1 + $0xc] sm:$0xf]
        %v1319 = vld [vmem:[%s1 + $0x10] sm:$0x3]
        %v1325 = vunpack.c.l.b16 %v1315
        %v1326 = vunpack.c.l.b16 %v1316
        %v1327 = vunpack.c.l.b16 %v1317
        %v1328 = vunpack.c.l.b16 %v1318
        %v1329 = vunpack.c.l.b16 %v1319
        %v1330 = vpack.c.b16 %v1326, %v1325
        %v1331 = vpack.c.b16 %v1328, %v1327
        %v1332 = vpack.c.b16 %v1329, %v1329
        %vm1335 = vcmask 293888
        %v1337 = vsel %vm1335, %v1299, 0
        %v1340 = vsel %vm1335, %v1300, 0
        %v1343 = vsel %vm1335, %v1301, 0
        %v1346 = vsel %vm1335, %v1302, 0
        %v1349 = vsel %vm1335, %v1303, 0
        %v1352 = vsel %vm1335, %v1304, 0
        %v1355 = vsel %vm1335, %v1305, 0
        %v1358 = vsel %vm1335, %v1306, 0
        %v1361 = vsel %vm1335, %v1307, 0
        %v1364 = vsel %vm1335, %v1308, 0
        %v1367 = vsel %vm1335, %v1309, 0
        %v1370 = vsel %vm1335, %v1310, 0
        %v1373 = vsel %vm1335, %v1311, 0
        %v1376 = vsel %vm1335, %v1312, 0
        %v1379 = vsel %vm1335, %v1313, 0
        %v1382 = vsel %vm1335, %v1314, 0
        %vm1384 = vcmask 1041408
        %v1386 = vsel %vm1384, %v1332, 0
        %1388 = vmatprep.subr.bf16.mxu0 0
        %1389 = vmatpush1.bf16.msra.mxu0 %v1330
        %1390 = vmatprep.subr.bf16.mxu0 0
        %1391 = vmatpush1.bf16.msra.mxu0 %v1331
        %1392 = vmatprep.subr.bf16.mxu0 0
        %1393 = vmatpush1.bf16.msra.mxu0 %v1386
        %1394 = vmatprep.subr.bf16.mxu0 0
        %1395 = vmatpush1.bf16.msra.mxu0 0
        %1396 = vmatprep.subr.bf16.mxu0 0
        %1397 = vmatpush1.bf16.msra.mxu0 0
        %1398 = vmatprep.subr.bf16.mxu0 0
        %1399 = vmatpush1.bf16.msra.mxu0 0
        %1400 = vmatprep.subr.bf16.mxu0 0
        %1401 = vmatpush1.bf16.msra.mxu0 0
        %1402 = vmatprep.subr.bf16.mxu0 0
        %1403 = vmatpush1.bf16.msra.mxu0 0
        %1404 = vmatprep.subr.bf16.mxu0 0
        %1405 = vmatpush1.bf16.msra.mxu0 0
        %1406 = vmatprep.subr.bf16.mxu0 0
        %1407 = vmatpush1.bf16.msra.mxu0 0
        %1408 = vmatprep.subr.bf16.mxu0 0
        %1409 = vmatpush1.bf16.msra.mxu0 0
        %1410 = vmatprep.subr.bf16.mxu0 0
        %1411 = vmatpush1.bf16.msra.mxu0 0
        %1412 = vmatprep.subr.bf16.mxu0 0
        %1413 = vmatpush1.bf16.msra.mxu0 0
        %1414 = vmatprep.subr.bf16.mxu0 0
        %1415 = vmatpush1.bf16.msra.mxu0 0
        %1416 = vmatprep.subr.bf16.mxu0 0
        %1417 = vmatpush1.bf16.msra.mxu0 0
        %1418 = vmatprep.subr.bf16.mxu0 0
        %1419 = vmatpush1.bf16.msra.mxu0 0
        %1420 = vmatprep.mubr.bf16.mxu0 0
        %1421 = vmatmul.mubr.bf16.gmra.mrb[0].mxu0 %v1337
        %v1422 = vpop.f32.mrb[0].mxu0
        %v1423 = vadd.f32 0.0, %v1422
        %v1424 = vpop.f32.mrb[0].mxu0
        %v1425 = vpop.f32.mrb[0].mxu0
        %v1426 = vadd.f32 0.0, %v1425
        %v1427 = vpop.f32.mrb[0].mxu0
        %1428 = vmatprep.mubr.bf16.mxu0 0
        %1429 = vmatmul.mubr.bf16.gmra.mrb[0].mxu0 %v1340
        %v1430 = vpop.f32.mrb[0].mxu0
        %v1431 = vadd.f32 0.0, %v1430
        %v1432 = vpop.f32.mrb[0].mxu0
        %v1433 = vpop.f32.mrb[0].mxu0
        %v1434 = vadd.f32 0.0, %v1433
        %v1435 = vpop.f32.mrb[0].mxu0
        %1436 = vmatprep.mubr.bf16.mxu0 0
        %1437 = vmatmul.mubr.bf16.gmra.mrb[0].mxu0 %v1343
        %v1438 = vpop.f32.mrb[0].mxu0
        %v1439 = vadd.f32 0.0, %v1438
        %v1440 = vpop.f32.mrb[0].mxu0
        %v1441 = vpop.f32.mrb[0].mxu0
        %v1442 = vadd.f32 0.0, %v1441
        %v1443 = vpop.f32.mrb[0].mxu0
        %1444 = vmatprep.mubr.bf16.mxu0 0
        %1445 = vmatmul.mubr.bf16.gmra.mrb[0].mxu0 %v1346
        %v1446 = vpop.f32.mrb[0].mxu0
        %v1447 = vadd.f32 0.0, %v1446
        %v1448 = vpop.f32.mrb[0].mxu0
        %v1449 = vpop.f32.mrb[0].mxu0
        %v1450 = vadd.f32 0.0, %v1449
        %v1451 = vpop.f32.mrb[0].mxu0
        %1452 = vmatprep.mubr.bf16.mxu0 0
        %1453 = vmatmul.mubr.bf16.gmra.mrb[0].mxu0 %v1349
        %v1454 = vpop.f32.mrb[0].mxu0
        %v1455 = vadd.f32 0.0, %v1454
        %v1456 = vpop.f32.mrb[0].mxu0
        %v1457 = vpop.f32.mrb[0].mxu0
        %v1458 = vadd.f32 0.0, %v1457
        %v1459 = vpop.f32.mrb[0].mxu0
        %1460 = vmatprep.mubr.bf16.mxu0 0
        %1461 = vmatmul.mubr.bf16.gmra.mrb[0].mxu0 %v1352
        %v1462 = vpop.f32.mrb[0].mxu0
        %v1463 = vadd.f32 0.0, %v1462
        %v1464 = vpop.f32.mrb[0].mxu0
        %v1465 = vpop.f32.mrb[0].mxu0
        %v1466 = vadd.f32 0.0, %v1465
        %v1467 = vpop.f32.mrb[0].mxu0
        %1468 = vmatprep.mubr.bf16.mxu0 0
        %1469 = vmatmul.mubr.bf16.gmra.mrb[0].mxu0 %v1355
        %v1470 = vpop.f32.mrb[0].mxu0
        %v1471 = vadd.f32 0.0, %v1470
        %v1472 = vpop.f32.mrb[0].mxu0
        %v1473 = vpop.f32.mrb[0].mxu0
        %v1474 = vadd.f32 0.0, %v1473
        %v1475 = vpop.f32.mrb[0].mxu0
        %1476 = vmatprep.mubr.bf16.mxu0 0
        %1477 = vmatmul.mubr.bf16.gmra.mrb[0].mxu0 %v1358
        %v1478 = vpop.f32.mrb[0].mxu0
        %v1479 = vadd.f32 0.0, %v1478
        %v1480 = vpop.f32.mrb[0].mxu0
        %v1481 = vpop.f32.mrb[0].mxu0
        %v1482 = vadd.f32 0.0, %v1481
        %v1483 = vpop.f32.mrb[0].mxu0
        %1484 = vmatprep.mubr.bf16.mxu0 0
        %1485 = vmatmul.mubr.bf16.gmra.mrb[0].mxu0 %v1361
        %v1486 = vpop.f32.mrb[0].mxu0
        %v1487 = vadd.f32 0.0, %v1486
        %v1488 = vpop.f32.mrb[0].mxu0
        %v1489 = vpop.f32.mrb[0].mxu0
        %v1490 = vadd.f32 0.0, %v1489
        %v1491 = vpop.f32.mrb[0].mxu0
        %1492 = vmatprep.mubr.bf16.mxu0 0
        %1493 = vmatmul.mubr.bf16.gmra.mrb[0].mxu0 %v1364
        %v1494 = vpop.f32.mrb[0].mxu0
        %v1495 = vadd.f32 0.0, %v1494
        %v1496 = vpop.f32.mrb[0].mxu0
        %v1497 = vpop.f32.mrb[0].mxu0
        %v1498 = vadd.f32 0.0, %v1497
        %v1499 = vpop.f32.mrb[0].mxu0
        %1500 = vmatprep.mubr.bf16.mxu0 0
        %1501 = vmatmul.mubr.bf16.gmra.mrb[0].mxu0 %v1367
        %v1502 = vpop.f32.mrb[0].mxu0
        %v1503 = vadd.f32 0.0, %v1502
        %v1504 = vpop.f32.mrb[0].mxu0
        %v1505 = vpop.f32.mrb[0].mxu0
        %v1506 = vadd.f32 0.0, %v1505
        %v1507 = vpop.f32.mrb[0].mxu0
        %1508 = vmatprep.mubr.bf16.mxu0 0
        %1509 = vmatmul.mubr.bf16.gmra.mrb[0].mxu0 %v1370
        %v1510 = vpop.f32.mrb[0].mxu0
        %v1511 = vadd.f32 0.0, %v1510
        %v1512 = vpop.f32.mrb[0].mxu0
        %v1513 = vpop.f32.mrb[0].mxu0
        %v1514 = vadd.f32 0.0, %v1513
        %v1515 = vpop.f32.mrb[0].mxu0
        %1516 = vmatprep.mubr.bf16.mxu0 0
        %1517 = vmatmul.mubr.bf16.gmra.mrb[0].mxu0 %v1373
        %v1518 = vpop.f32.mrb[0].mxu0
        %v1519 = vadd.f32 0.0, %v1518
        %v1520 = vpop.f32.mrb[0].mxu0
        %v1521 = vpop.f32.mrb[0].mxu0
        %v1522 = vadd.f32 0.0, %v1521
        %v1523 = vpop.f32.mrb[0].mxu0
        %1524 = vmatprep.mubr.bf16.mxu0 0
        %1525 = vmatmul.mubr.bf16.gmra.mrb[0].mxu0 %v1376
        %v1526 = vpop.f32.mrb[0].mxu0
        %v1527 = vadd.f32 0.0, %v1526
        %v1528 = vpop.f32.mrb[0].mxu0
        %v1529 = vpop.f32.mrb[0].mxu0
        %v1530 = vadd.f32 0.0, %v1529
        %v1531 = vpop.f32.mrb[0].mxu0
        %1532 = vmatprep.mubr.bf16.mxu0 0
        %1533 = vmatmul.mubr.bf16.gmra.mrb[0].mxu0 %v1379
        %v1534 = vpop.f32.mrb[0].mxu0
        %v1535 = vadd.f32 0.0, %v1534
        %v1536 = vpop.f32.mrb[0].mxu0
        %v1537 = vpop.f32.mrb[0].mxu0
        %v1538 = vadd.f32 0.0, %v1537
        %v1539 = vpop.f32.mrb[0].mxu0
        %1540 = vmatprep.mubr.bf16.mxu0 0
        %1541 = vmatmul.mubr.bf16.gmra.mrb[0].mxu0 %v1382
        %v1542 = vpop.f32.mrb[0].mxu0
        %v1543 = vadd.f32 0.0, %v1542
        %v1544 = vpop.f32.mrb[0].mxu0
        %v1545 = vpop.f32.mrb[0].mxu0
        %v1546 = vadd.f32 0.0, %v1545
        %v1547 = vpop.f32.mrb[0].mxu0
        %1548 = vdwg.mxu0
        %vm1549 = vcmask 64512
        %v1550 = vsel %vm1549, %v1423, 0.0
        %v1551 = vsel %vm1549, %v1426, 0.0
        %v1552 = vadd.f32 %v1550, %v1551
        %v1553 = vsel %vm1549, %v1431, 0.0
        %v1554 = vadd.f32 %v1552, %v1553
        %v1555 = vsel %vm1549, %v1434, 0.0
        %v1556 = vadd.f32 %v1554, %v1555
        %v1557 = vsel %vm1549, %v1439, 0.0
        %v1558 = vadd.f32 %v1556, %v1557
        %v1559 = vsel %vm1549, %v1442, 0.0
        %v1560 = vadd.f32 %v1558, %v1559
        %v1561 = vsel %vm1549, %v1447, 0.0
        %v1562 = vadd.f32 %v1560, %v1561
        %v1563 = vsel %vm1549, %v1450, 0.0
        %v1564 = vadd.f32 %v1562, %v1563
        %v1565 = vsel %vm1549, %v1455, 0.0
        %v1566 = vadd.f32 %v1564, %v1565
        %v1567 = vsel %vm1549, %v1458, 0.0
        %v1568 = vadd.f32 %v1566, %v1567
        %v1569 = vsel %vm1549, %v1463, 0.0
        %v1570 = vadd.f32 %v1568, %v1569
        %v1571 = vsel %vm1549, %v1466, 0.0
        %v1572 = vadd.f32 %v1570, %v1571
        %v1573 = vsel %vm1549, %v1471, 0.0
        %v1574 = vadd.f32 %v1572, %v1573
        %v1575 = vsel %vm1549, %v1474, 0.0
        %v1576 = vadd.f32 %v1574, %v1575
        %v1577 = vsel %vm1549, %v1479, 0.0
        %v1578 = vadd.f32 %v1576, %v1577
        %v1579 = vsel %vm1549, %v1482, 0.0
        %v1580 = vadd.f32 %v1578, %v1579
        %v1581 = vsel %vm1549, %v1487, 0.0
        %v1582 = vadd.f32 %v1580, %v1581
        %v1583 = vsel %vm1549, %v1490, 0.0
        %v1584 = vadd.f32 %v1582, %v1583
        %v1585 = vsel %vm1549, %v1495, 0.0
        %v1586 = vadd.f32 %v1584, %v1585
        %v1587 = vsel %vm1549, %v1498, 0.0
        %v1588 = vadd.f32 %v1586, %v1587
        %v1589 = vsel %vm1549, %v1503, 0.0
        %v1590 = vadd.f32 %v1588, %v1589
        %v1591 = vsel %vm1549, %v1506, 0.0
        %v1592 = vadd.f32 %v1590, %v1591
        %v1593 = vsel %vm1549, %v1511, 0.0
        %v1594 = vadd.f32 %v1592, %v1593
        %v1595 = vsel %vm1549, %v1514, 0.0
        %v1596 = vadd.f32 %v1594, %v1595
        %v1597 = vsel %vm1549, %v1519, 0.0
        %v1598 = vadd.f32 %v1596, %v1597
        %v1599 = vsel %vm1549, %v1522, 0.0
        %v1600 = vadd.f32 %v1598, %v1599
        %v1601 = vsel %vm1549, %v1527, 0.0
        %v1602 = vadd.f32 %v1600, %v1601
        %v1603 = vsel %vm1549, %v1530, 0.0
        %v1604 = vadd.f32 %v1602, %v1603
        %v1605 = vsel %vm1549, %v1535, 0.0
        %v1606 = vadd.f32 %v1604, %v1605
        %v1607 = vsel %vm1549, %v1538, 0.0
        %v1608 = vadd.f32 %v1606, %v1607
        %v1609 = vsel %vm1549, %v1543, 0.0
        %v1610 = vadd.f32 %v1608, %v1609
        %v1611 = vsel %vm1549, %v1546, 0.0
        %v1612 = vadd.f32 %v1610, %v1611
        %v1613 = vrot.slane %v1612, 4
        %v1614 = vadd.f32 %v1612, %v1613
        %v1615 = vrot.slane %v1614, 2
        %v1616 = vadd.f32 %v1614, %v1615
        %v1617 = vrot.slane %v1616, 1
        %v1618 = vadd.f32 %v1616, %v1617
        %vm1619 = vcmask 57344
        %1620 = vst.msk [vmem:[%s252] sm:$0x1] %vm1619, %v1618
        %v1621 = vmul.f32 %v1423, %v1423
        %v1622 = vmul.f32 %v1426, %v1426
        %v1623 = vmul.f32 %v1431, %v1431
        %v1624 = vmul.f32 %v1434, %v1434
        %v1625 = vmul.f32 %v1439, %v1439
        %v1626 = vmul.f32 %v1442, %v1442
        %v1627 = vmul.f32 %v1447, %v1447
        %v1628 = vmul.f32 %v1450, %v1450
        %v1629 = vmul.f32 %v1455, %v1455
        %v1630 = vmul.f32 %v1458, %v1458
        %v1631 = vmul.f32 %v1463, %v1463
        %v1632 = vmul.f32 %v1466, %v1466
        %v1633 = vmul.f32 %v1471, %v1471
        %v1634 = vmul.f32 %v1474, %v1474
        %v1635 = vmul.f32 %v1479, %v1479
        %v1636 = vmul.f32 %v1482, %v1482
        %v1637 = vmul.f32 %v1487, %v1487
        %v1638 = vmul.f32 %v1490, %v1490
        %v1639 = vmul.f32 %v1495, %v1495
        %v1640 = vmul.f32 %v1498, %v1498
        %v1641 = vmul.f32 %v1503, %v1503
        %v1642 = vmul.f32 %v1506, %v1506
        %v1643 = vmul.f32 %v1511, %v1511
        %v1644 = vmul.f32 %v1514, %v1514
        %v1645 = vmul.f32 %v1519, %v1519
        %v1646 = vmul.f32 %v1522, %v1522
        %v1647 = vmul.f32 %v1527, %v1527
        %v1648 = vmul.f32 %v1530, %v1530
        %v1649 = vmul.f32 %v1535, %v1535
        %v1650 = vmul.f32 %v1538, %v1538
        %v1651 = vmul.f32 %v1543, %v1543
        %v1652 = vmul.f32 %v1546, %v1546
        %v1653 = vsel %vm1549, %v1621, 0.0
        %v1654 = vsel %vm1549, %v1622, 0.0
        %v1655 = vadd.f32 %v1653, %v1654
        %v1656 = vsel %vm1549, %v1623, 0.0
        %v1657 = vadd.f32 %v1655, %v1656
        %v1658 = vsel %vm1549, %v1624, 0.0
        %v1659 = vadd.f32 %v1657, %v1658
        %v1660 = vsel %vm1549, %v1625, 0.0
        %v1661 = vadd.f32 %v1659, %v1660
        %v1662 = vsel %vm1549, %v1626, 0.0
        %v1663 = vadd.f32 %v1661, %v1662
        %v1664 = vsel %vm1549, %v1627, 0.0
        %v1665 = vadd.f32 %v1663, %v1664
        %v1666 = vsel %vm1549, %v1628, 0.0
        %v1667 = vadd.f32 %v1665, %v1666
        %v1668 = vsel %vm1549, %v1629, 0.0
        %v1669 = vadd.f32 %v1667, %v1668
        %v1670 = vsel %vm1549, %v1630, 0.0
        %v1671 = vadd.f32 %v1669, %v1670
        %v1672 = vsel %vm1549, %v1631, 0.0
        %v1673 = vadd.f32 %v1671, %v1672
        %v1674 = vsel %vm1549, %v1632, 0.0
        %v1675 = vadd.f32 %v1673, %v1674
        %v1676 = vsel %vm1549, %v1633, 0.0
        %v1677 = vadd.f32 %v1675, %v1676
        %v1678 = vsel %vm1549, %v1634, 0.0
        %v1679 = vadd.f32 %v1677, %v1678
        %v1680 = vsel %vm1549, %v1635, 0.0
        %v1681 = vadd.f32 %v1679, %v1680
        %v1682 = vsel %vm1549, %v1636, 0.0
        %v1683 = vadd.f32 %v1681, %v1682
        %v1684 = vsel %vm1549, %v1637, 0.0
        %v1685 = vadd.f32 %v1683, %v1684
        %v1686 = vsel %vm1549, %v1638, 0.0
        %v1687 = vadd.f32 %v1685, %v1686
        %v1688 = vsel %vm1549, %v1639, 0.0
        %v1689 = vadd.f32 %v1687, %v1688
        %v1690 = vsel %vm1549, %v1640, 0.0
        %v1691 = vadd.f32 %v1689, %v1690
        %v1692 = vsel %vm1549, %v1641, 0.0
        %v1693 = vadd.f32 %v1691, %v1692
        %v1694 = vsel %vm1549, %v1642, 0.0
        %v1695 = vadd.f32 %v1693, %v1694
        %v1696 = vsel %vm1549, %v1643, 0.0
        %v1697 = vadd.f32 %v1695, %v1696
        %v1698 = vsel %vm1549, %v1644, 0.0
        %v1699 = vadd.f32 %v1697, %v1698
        %v1700 = vsel %vm1549, %v1645, 0.0
        %v1701 = vadd.f32 %v1699, %v1700
        %v1702 = vsel %vm1549, %v1646, 0.0
        %v1703 = vadd.f32 %v1701, %v1702
        %v1704 = vsel %vm1549, %v1647, 0.0
        %v1705 = vadd.f32 %v1703, %v1704
        %v1706 = vsel %vm1549, %v1648, 0.0
        %v1707 = vadd.f32 %v1705, %v1706
        %v1708 = vsel %vm1549, %v1649, 0.0
        %v1709 = vadd.f32 %v1707, %v1708
        %v1710 = vsel %vm1549, %v1650, 0.0
        %v1711 = vadd.f32 %v1709, %v1710
        %v1712 = vsel %vm1549, %v1651, 0.0
        %v1713 = vadd.f32 %v1711, %v1712
        %v1714 = vsel %vm1549, %v1652, 0.0
        %v1715 = vadd.f32 %v1713, %v1714
        %v1716 = vrot.slane %v1715, 4
        %v1717 = vadd.f32 %v1715, %v1716
        %v1718 = vrot.slane %v1717, 2
        %v1719 = vadd.f32 %v1717, %v1718
        %v1720 = vrot.slane %v1719, 1
        %v1721 = vadd.f32 %v1719, %v1720
        %1722 = vst.msk [vmem:[%s252 + $0x1] sm:$0x1] %vm1619, %v1721
        %v1723 = vpack.c.bf16 %v1426, %v1423
        %v1724 = vpack.c.bf16 %v1434, %v1431
        %v1725 = vpack.c.bf16 %v1442, %v1439
        %v1726 = vpack.c.bf16 %v1450, %v1447
        %v1727 = vpack.c.bf16 %v1458, %v1455
        %v1728 = vpack.c.bf16 %v1466, %v1463
        %v1729 = vpack.c.bf16 %v1474, %v1471
        %v1730 = vpack.c.bf16 %v1482, %v1479
        %v1731 = vpack.c.bf16 %v1490, %v1487
        %v1732 = vpack.c.bf16 %v1498, %v1495
        %v1733 = vpack.c.bf16 %v1506, %v1503
        %v1734 = vpack.c.bf16 %v1514, %v1511
        %v1735 = vpack.c.bf16 %v1522, %v1519
        %v1736 = vpack.c.bf16 %v1530, %v1527
        %v1737 = vpack.c.bf16 %v1538, %v1535
        %v1738 = vpack.c.bf16 %v1546, %v1543
        %v1755 = vunpack.c.l.b16 %v1723
        %v1756 = vunpack.c.h.b16 %v1723
        %v1757 = vunpack.c.l.b16 %v1724
        %v1758 = vunpack.c.h.b16 %v1724
        %v1759 = vunpack.c.l.b16 %v1725
        %v1760 = vunpack.c.h.b16 %v1725
        %v1761 = vunpack.c.l.b16 %v1726
        %v1762 = vunpack.c.h.b16 %v1726
        %v1763 = vunpack.c.l.b16 %v1727
        %v1764 = vunpack.c.h.b16 %v1727
        %v1765 = vunpack.c.l.b16 %v1728
        %v1766 = vunpack.c.h.b16 %v1728
        %v1767 = vunpack.c.l.b16 %v1729
        %v1768 = vunpack.c.h.b16 %v1729
        %v1769 = vunpack.c.l.b16 %v1730
        %v1770 = vunpack.c.h.b16 %v1730
        %v1771 = vunpack.c.l.b16 %v1731
        %v1772 = vunpack.c.h.b16 %v1731
        %v1773 = vunpack.c.l.b16 %v1732
        %v1774 = vunpack.c.h.b16 %v1732
        %v1775 = vunpack.c.l.b16 %v1733
        %v1776 = vunpack.c.h.b16 %v1733
        %v1777 = vunpack.c.l.b16 %v1734
        %v1778 = vunpack.c.h.b16 %v1734
        %v1779 = vunpack.c.l.b16 %v1735
        %v1780 = vunpack.c.h.b16 %v1735
        %v1781 = vunpack.c.l.b16 %v1736
        %v1782 = vunpack.c.h.b16 %v1736
        %v1783 = vunpack.c.l.b16 %v1737
        %v1784 = vunpack.c.h.b16 %v1737
        %v1785 = vunpack.c.l.b16 %v1738
        %v1786 = vunpack.c.h.b16 %v1738
        %v1787 = vpack.c.b16 %v1755, %v1755
        %v1788 = vpack.c.b16 %v1756, %v1756
        %v1789 = vpack.c.b16 %v1757, %v1757
        %v1790 = vpack.c.b16 %v1758, %v1758
        %v1791 = vpack.c.b16 %v1759, %v1759
        %v1792 = vpack.c.b16 %v1760, %v1760
        %v1793 = vpack.c.b16 %v1761, %v1761
        %v1794 = vpack.c.b16 %v1762, %v1762
        %v1795 = vpack.c.b16 %v1763, %v1763
        %v1796 = vpack.c.b16 %v1764, %v1764
        %v1797 = vpack.c.b16 %v1765, %v1765
        %v1798 = vpack.c.b16 %v1766, %v1766
        %v1799 = vpack.c.b16 %v1767, %v1767
        %v1800 = vpack.c.b16 %v1768, %v1768
        %v1801 = vpack.c.b16 %v1769, %v1769
        %v1802 = vpack.c.b16 %v1770, %v1770
        %v1803 = vpack.c.b16 %v1771, %v1771
        %v1804 = vpack.c.b16 %v1772, %v1772
        %v1805 = vpack.c.b16 %v1773, %v1773
        %v1806 = vpack.c.b16 %v1774, %v1774
        %v1807 = vpack.c.b16 %v1775, %v1775
        %v1808 = vpack.c.b16 %v1776, %v1776
        %v1809 = vpack.c.b16 %v1777, %v1777
        %v1810 = vpack.c.b16 %v1778, %v1778
        %v1811 = vpack.c.b16 %v1779, %v1779
        %v1812 = vpack.c.b16 %v1780, %v1780
        %v1813 = vpack.c.b16 %v1781, %v1781
        %v1814 = vpack.c.b16 %v1782, %v1782
        %v1815 = vpack.c.b16 %v1783, %v1783
        %v1816 = vpack.c.b16 %v1784, %v1784
        %v1817 = vpack.c.b16 %v1785, %v1785
        %v1818 = vpack.c.b16 %v1786, %v1786
        %vm1851 = vcmask 60416
        %1852 = vst.msk [vmem:[%s269] sm:$0xf] %vm1851, %v1787
        %1853 = vst.msk [vmem:[%s269 + $0x4] sm:$0xf] %vm1851, %v1788
        %1854 = vst.msk [vmem:[%s269 + $0x8] sm:$0xf] %vm1851, %v1789
        %1855 = vst.msk [vmem:[%s269 + $0xc] sm:$0xf] %vm1851, %v1790
        %1856 = vst.msk [vmem:[%s269 + $0x10] sm:$0xf] %vm1851, %v1791
        %1857 = vst.msk [vmem:[%s269 + $0x14] sm:$0xf] %vm1851, %v1792
        %1858 = vst.msk [vmem:[%s269 + $0x18] sm:$0xf] %vm1851, %v1793
        %1859 = vst.msk [vmem:[%s269 + $0x1c] sm:$0xf] %vm1851, %v1794
        %1860 = vst.msk [vmem:[%s269 + $0x20] sm:$0xf] %vm1851, %v1795
        %1861 = vst.msk [vmem:[%s269 + $0x24] sm:$0xf] %vm1851, %v1796
        %1862 = vst.msk [vmem:[%s269 + $0x28] sm:$0xf] %vm1851, %v1797
        %1863 = vst.msk [vmem:[%s269 + $0x2c] sm:$0xf] %vm1851, %v1798
        %1864 = vst.msk [vmem:[%s269 + $0x30] sm:$0xf] %vm1851, %v1799
        %1865 = vst.msk [vmem:[%s269 + $0x34] sm:$0xf] %vm1851, %v1800
        %1866 = vst.msk [vmem:[%s269 + $0x38] sm:$0xf] %vm1851, %v1801
        %1867 = vst.msk [vmem:[%s269 + $0x3c] sm:$0xf] %vm1851, %v1802
        %1868 = vst.msk [vmem:[%s269 + $0x40] sm:$0xf] %vm1851, %v1803
        %1869 = vst.msk [vmem:[%s269 + $0x44] sm:$0xf] %vm1851, %v1804
        %1870 = vst.msk [vmem:[%s269 + $0x48] sm:$0xf] %vm1851, %v1805
        %1871 = vst.msk [vmem:[%s269 + $0x4c] sm:$0xf] %vm1851, %v1806
        %1872 = vst.msk [vmem:[%s269 + $0x50] sm:$0xf] %vm1851, %v1807
        %1873 = vst.msk [vmem:[%s269 + $0x54] sm:$0xf] %vm1851, %v1808
        %1874 = vst.msk [vmem:[%s269 + $0x58] sm:$0xf] %vm1851, %v1809
        %1875 = vst.msk [vmem:[%s269 + $0x5c] sm:$0xf] %vm1851, %v1810
        %1876 = vst.msk [vmem:[%s269 + $0x60] sm:$0xf] %vm1851, %v1811
        %1877 = vst.msk [vmem:[%s269 + $0x64] sm:$0xf] %vm1851, %v1812
        %1878 = vst.msk [vmem:[%s269 + $0x68] sm:$0xf] %vm1851, %v1813
        %1879 = vst.msk [vmem:[%s269 + $0x6c] sm:$0xf] %vm1851, %v1814
        %1880 = vst.msk [vmem:[%s269 + $0x70] sm:$0xf] %vm1851, %v1815
        %1881 = vst.msk [vmem:[%s269 + $0x74] sm:$0xf] %vm1851, %v1816
        %1882 = vst.msk [vmem:[%s269 + $0x78] sm:$0xf] %vm1851, %v1817
        %1883 = vst.msk [vmem:[%s269 + $0x7c] sm:$0xf] %vm1851, %v1818
        %vm1884 = vsmask.f32 3328
        %vm1885 = vsmask.f32 7440
        %vm1886 = vmor %vm1884, %vm1885
        %v1888 = vshrl.u32 %v279, 16
        %v1890 = vrot.slane %v1888, 4
        %v1891 = vshll.u32 %v279, 16
        %v1893 = vrot.slane %v1891, 5
        %v1894 = vor.u32 %v1890, %v1893
        %v1895 = vrot.slane %v1894, 4
        %v1897 = vshll.u32 %v280, 16
        %v1899 = vrot.slane %v1897, 5
        %v1900 = vsel %vm1886, %v1895, %v1899
        %v1901 = vshrl.u32 %v280, 16
        %v1903 = vrot.slane %v1901, 4
        %v1904 = vor.u32 %v1903, %v1899
        %v1905 = vrot.slane %v1904, 4
        %v1907 = vshll.u32 %v281, 16
        %v1909 = vrot.slane %v1907, 5
        %v1910 = vsel %vm1886, %v1905, %v1909
        %v1912 = vshrl.u32 %v282, 16
        %v1914 = vrot.slane %v1912, 4
        %v1915 = vshll.u32 %v282, 16
        %v1917 = vrot.slane %v1915, 5
        %v1918 = vor.u32 %v1914, %v1917
        %v1919 = vrot.slane %v1918, 4
        %v1921 = vshll.u32 %v283, 16
        %v1923 = vrot.slane %v1921, 5
        %v1924 = vsel %vm1886, %v1919, %v1923
        %v1925 = vshrl.u32 %v283, 16
        %v1927 = vrot.slane %v1925, 4
        %v1928 = vor.u32 %v1927, %v1923
        %v1929 = vrot.slane %v1928, 4
        %v1931 = vshll.u32 %v284, 16
        %v1933 = vrot.slane %v1931, 5
        %v1934 = vsel %vm1886, %v1929, %v1933
        %v1936 = vshrl.u32 %v285, 16
        %v1938 = vrot.slane %v1936, 4
        %v1939 = vshll.u32 %v285, 16
        %v1941 = vrot.slane %v1939, 5
        %v1942 = vor.u32 %v1938, %v1941
        %v1943 = vrot.slane %v1942, 4
        %v1945 = vshll.u32 %v286, 16
        %v1947 = vrot.slane %v1945, 5
        %v1948 = vsel %vm1886, %v1943, %v1947
        %v1949 = vshrl.u32 %v286, 16
        %v1951 = vrot.slane %v1949, 4
        %v1952 = vor.u32 %v1951, %v1947
        %v1953 = vrot.slane %v1952, 4
        %v1955 = vshll.u32 %v287, 16
        %v1957 = vrot.slane %v1955, 5
        %v1958 = vsel %vm1886, %v1953, %v1957
        %v1960 = vshrl.u32 %v288, 16
        %v1962 = vrot.slane %v1960, 4
        %v1963 = vshll.u32 %v288, 16
        %v1965 = vrot.slane %v1963, 5
        %v1966 = vor.u32 %v1962, %v1965
        %v1967 = vrot.slane %v1966, 4
        %v1969 = vshll.u32 %v289, 16
        %v1971 = vrot.slane %v1969, 5
        %v1972 = vsel %vm1886, %v1967, %v1971
        %v1973 = vshrl.u32 %v289, 16
        %v1975 = vrot.slane %v1973, 4
        %v1976 = vor.u32 %v1975, %v1971
        %v1977 = vrot.slane %v1976, 4
        %v1979 = vshll.u32 %v290, 16
        %v1981 = vrot.slane %v1979, 5
        %v1982 = vsel %vm1886, %v1977, %v1981
        %v1984 = vshrl.u32 %v291, 16
        %v1986 = vrot.slane %v1984, 4
        %v1987 = vshll.u32 %v291, 16
        %v1989 = vrot.slane %v1987, 5
        %v1990 = vor.u32 %v1986, %v1989
        %v1991 = vrot.slane %v1990, 4
        %v1993 = vshll.u32 %v292, 16
        %v1995 = vrot.slane %v1993, 5
        %v1996 = vsel %vm1886, %v1991, %v1995
        %v1997 = vshrl.u32 %v292, 16
        %v1999 = vrot.slane %v1997, 4
        %v2000 = vor.u32 %v1999, %v1995
        %v2001 = vrot.slane %v2000, 4
        %v2003 = vshll.u32 %v293, 16
        %v2005 = vrot.slane %v2003, 5
        %v2006 = vsel %vm1886, %v2001, %v2005
        %v2008 = vshrl.u32 %v294, 16
        %v2010 = vrot.slane %v2008, 4
        %v2011 = vshll.u32 %v294, 16
        %v2013 = vrot.slane %v2011, 5
        %v2014 = vor.u32 %v2010, %v2013
        %v2015 = vrot.slane %v2014, 4
        %v2017 = vshll.u32 %v295, 16
        %v2019 = vrot.slane %v2017, 5
        %v2020 = vsel %vm1886, %v2015, %v2019
        %v2021 = vshrl.u32 %v295, 16
        %v2023 = vrot.slane %v2021, 4
        %v2024 = vor.u32 %v2023, %v2019
        %v2025 = vrot.slane %v2024, 4
        %v2027 = vshll.u32 %v296, 16
        %v2029 = vrot.slane %v2027, 5
        %v2030 = vsel %vm1886, %v2025, %v2029
        %v2032 = vshrl.u32 %v297, 16
        %v2034 = vrot.slane %v2032, 4
        %v2035 = vshll.u32 %v297, 16
        %v2037 = vrot.slane %v2035, 5
        %v2038 = vor.u32 %v2034, %v2037
        %v2039 = vrot.slane %v2038, 4
        %v2041 = vshll.u32 %v298, 16
        %v2043 = vrot.slane %v2041, 5
        %v2044 = vsel %vm1886, %v2039, %v2043
        %v2045 = vshrl.u32 %v298, 16
        %v2047 = vrot.slane %v2045, 4
        %v2048 = vor.u32 %v2047, %v2043
        %v2049 = vrot.slane %v2048, 4
        %v2051 = vshll.u32 %v299, 16
        %v2053 = vrot.slane %v2051, 5
        %v2054 = vsel %vm1886, %v2049, %v2053
        %v2056 = vshrl.u32 %v300, 16
        %v2058 = vrot.slane %v2056, 4
        %v2059 = vshll.u32 %v300, 16
        %v2061 = vrot.slane %v2059, 5
        %v2062 = vor.u32 %v2058, %v2061
        %v2063 = vrot.slane %v2062, 4
        %v2065 = vshll.u32 %v301, 16
        %v2067 = vrot.slane %v2065, 5
        %v2068 = vsel %vm1886, %v2063, %v2067
        %v2069 = vshrl.u32 %v301, 16
        %v2071 = vrot.slane %v2069, 4
        %v2072 = vor.u32 %v2071, %v2067
        %v2073 = vrot.slane %v2072, 4
        %v2075 = vshll.u32 %v302, 16
        %v2077 = vrot.slane %v2075, 5
        %v2078 = vsel %vm1886, %v2073, %v2077
        %v2080 = vshrl.u32 %v303, 16
        %v2082 = vrot.slane %v2080, 4
        %v2083 = vshll.u32 %v303, 16
        %v2085 = vrot.slane %v2083, 5
        %v2086 = vor.u32 %v2082, %v2085
        %v2087 = vrot.slane %v2086, 4
        %v2089 = vshll.u32 %v304, 16
        %v2091 = vrot.slane %v2089, 5
        %v2092 = vsel %vm1886, %v2087, %v2091
        %v2093 = vshrl.u32 %v304, 16
        %v2095 = vrot.slane %v2093, 4
        %v2096 = vor.u32 %v2095, %v2091
        %v2097 = vrot.slane %v2096, 4
        %v2099 = vshll.u32 %v305, 16
        %v2101 = vrot.slane %v2099, 5
        %v2102 = vsel %vm1886, %v2097, %v2101
        %v2104 = vshrl.u32 %v306, 16
        %v2106 = vrot.slane %v2104, 4
        %v2107 = vshll.u32 %v306, 16
        %v2109 = vrot.slane %v2107, 5
        %v2110 = vor.u32 %v2106, %v2109
        %v2111 = vrot.slane %v2110, 4
        %v2113 = vshll.u32 %v307, 16
        %v2115 = vrot.slane %v2113, 5
        %v2116 = vsel %vm1886, %v2111, %v2115
        %v2117 = vshrl.u32 %v307, 16
        %v2119 = vrot.slane %v2117, 4
        %v2120 = vor.u32 %v2119, %v2115
        %v2121 = vrot.slane %v2120, 4
        %v2123 = vshll.u32 %v308, 16
        %v2125 = vrot.slane %v2123, 5
        %v2126 = vsel %vm1886, %v2121, %v2125
        %v2128 = vshrl.u32 %v309, 16
        %v2130 = vrot.slane %v2128, 4
        %v2131 = vshll.u32 %v309, 16
        %v2133 = vrot.slane %v2131, 5
        %v2134 = vor.u32 %v2130, %v2133
        %v2135 = vrot.slane %v2134, 4
        %v2137 = vshll.u32 %v310, 16
        %v2139 = vrot.slane %v2137, 5
        %v2140 = vsel %vm1886, %v2135, %v2139
        %v2141 = vshrl.u32 %v310, 16
        %v2143 = vrot.slane %v2141, 4
        %v2144 = vor.u32 %v2143, %v2139
        %v2145 = vrot.slane %v2144, 4
        %v2147 = vshll.u32 %v311, 16
        %v2149 = vrot.slane %v2147, 5
        %v2150 = vsel %vm1886, %v2145, %v2149
        %v2152 = vshrl.u32 %v312, 16
        %v2154 = vrot.slane %v2152, 4
        %v2155 = vshll.u32 %v312, 16
        %v2157 = vrot.slane %v2155, 5
        %v2158 = vor.u32 %v2154, %v2157
        %v2159 = vrot.slane %v2158, 4
        %v2161 = vshll.u32 %v313, 16
        %v2163 = vrot.slane %v2161, 5
        %v2164 = vsel %vm1886, %v2159, %v2163
        %v2165 = vshrl.u32 %v313, 16
        %v2167 = vrot.slane %v2165, 4
        %v2168 = vor.u32 %v2167, %v2163
        %v2169 = vrot.slane %v2168, 4
        %v2171 = vshll.u32 %v314, 16
        %v2173 = vrot.slane %v2171, 5
        %v2174 = vsel %vm1886, %v2169, %v2173
        %v2176 = vshrl.u32 %v315, 16
        %v2178 = vrot.slane %v2176, 4
        %v2179 = vshll.u32 %v315, 16
        %v2181 = vrot.slane %v2179, 5
        %v2182 = vor.u32 %v2178, %v2181
        %v2183 = vrot.slane %v2182, 4
        %v2185 = vshll.u32 %v316, 16
        %v2187 = vrot.slane %v2185, 5
        %v2188 = vsel %vm1886, %v2183, %v2187
        %v2189 = vshrl.u32 %v316, 16
        %v2191 = vrot.slane %v2189, 4
        %v2192 = vor.u32 %v2191, %v2187
        %v2193 = vrot.slane %v2192, 4
        %v2195 = vshll.u32 %v317, 16
        %v2197 = vrot.slane %v2195, 5
        %v2198 = vsel %vm1886, %v2193, %v2197
        %v2200 = vshrl.u32 %v318, 16
        %v2202 = vrot.slane %v2200, 4
        %v2203 = vshll.u32 %v318, 16
        %v2205 = vrot.slane %v2203, 5
        %v2206 = vor.u32 %v2202, %v2205
        %v2207 = vrot.slane %v2206, 4
        %v2209 = vshll.u32 %v319, 16
        %v2211 = vrot.slane %v2209, 5
        %v2212 = vsel %vm1886, %v2207, %v2211
        %v2213 = vshrl.u32 %v319, 16
        %v2215 = vrot.slane %v2213, 4
        %v2216 = vor.u32 %v2215, %v2211
        %v2217 = vrot.slane %v2216, 4
        %v2219 = vshll.u32 %v320, 16
        %v2221 = vrot.slane %v2219, 5
        %v2222 = vsel %vm1886, %v2217, %v2221
        %v2224 = vshrl.u32 %v321, 16
        %v2226 = vrot.slane %v2224, 4
        %v2227 = vshll.u32 %v321, 16
        %v2229 = vrot.slane %v2227, 5
        %v2230 = vor.u32 %v2226, %v2229
        %v2231 = vrot.slane %v2230, 4
        %v2233 = vshll.u32 %v322, 16
        %v2235 = vrot.slane %v2233, 5
        %v2236 = vsel %vm1886, %v2231, %v2235
        %v2237 = vshrl.u32 %v322, 16
        %v2239 = vrot.slane %v2237, 4
        %v2240 = vor.u32 %v2239, %v2235
        %v2241 = vrot.slane %v2240, 4
        %v2243 = vshll.u32 %v323, 16
        %v2245 = vrot.slane %v2243, 5
        %v2246 = vsel %vm1886, %v2241, %v2245
        %v2248 = vshrl.u32 %v324, 16
        %v2250 = vrot.slane %v2248, 4
        %v2251 = vshll.u32 %v324, 16
        %v2253 = vrot.slane %v2251, 5
        %v2254 = vor.u32 %v2250, %v2253
        %v2255 = vrot.slane %v2254, 4
        %v2257 = vshll.u32 %v325, 16
        %v2259 = vrot.slane %v2257, 5
        %v2260 = vsel %vm1886, %v2255, %v2259
        %v2261 = vshrl.u32 %v325, 16
        %v2263 = vrot.slane %v2261, 4
        %v2264 = vor.u32 %v2263, %v2259
        %v2265 = vrot.slane %v2264, 4
        %v2267 = vshll.u32 %v326, 16
        %v2269 = vrot.slane %v2267, 5
        %v2270 = vsel %vm1886, %v2265, %v2269
        %v2271 = vld [vmem:[%s2] sm:$0x3]
        %v2272 = vld [vmem:[%s3] sm:$0x1]
        %v2274 = vlaneseq
        %v2275 = vshrl.u32 %v2274, 7
        %v2276 = vsub.s32 0, %v2275
        %v2277 = vrot.slane %v2272, %v2276
        %v2279 = vunpack.c.l.b16 %v1900
        %v2280 = vunpack.c.l.b16 %v1910
        %v2281 = vunpack.c.l.b16 %v1924
        %v2282 = vunpack.c.l.b16 %v1934
        %v2283 = vunpack.c.l.b16 %v1948
        %v2284 = vunpack.c.l.b16 %v1958
        %v2285 = vunpack.c.l.b16 %v1972
        %v2286 = vunpack.c.l.b16 %v1982
        %v2287 = vunpack.c.l.b16 %v1996
        %v2288 = vunpack.c.l.b16 %v2006
        %v2289 = vunpack.c.l.b16 %v2020
        %v2290 = vunpack.c.l.b16 %v2030
        %v2291 = vunpack.c.l.b16 %v2044
        %v2292 = vunpack.c.l.b16 %v2054
        %v2293 = vunpack.c.l.b16 %v2068
        %v2294 = vunpack.c.l.b16 %v2078
        %v2295 = vunpack.c.l.b16 %v2092
        %v2296 = vunpack.c.l.b16 %v2102
        %v2297 = vunpack.c.l.b16 %v2116
        %v2298 = vunpack.c.l.b16 %v2126
        %v2299 = vunpack.c.l.b16 %v2140
        %v2300 = vunpack.c.l.b16 %v2150
        %v2301 = vunpack.c.l.b16 %v2164
        %v2302 = vunpack.c.l.b16 %v2174
        %v2303 = vunpack.c.l.b16 %v2188
        %v2304 = vunpack.c.l.b16 %v2198
        %v2305 = vunpack.c.l.b16 %v2212
        %v2306 = vunpack.c.l.b16 %v2222
        %v2307 = vunpack.c.l.b16 %v2236
        %v2308 = vunpack.c.l.b16 %v2246
        %v2309 = vunpack.c.l.b16 %v2260
        %v2310 = vunpack.c.l.b16 %v2270
        %v2311 = vpack.c.b16 %v2280, %v2279
        %v2312 = vpack.c.b16 %v2282, %v2281
        %v2313 = vpack.c.b16 %v2284, %v2283
        %v2314 = vpack.c.b16 %v2286, %v2285
        %v2315 = vpack.c.b16 %v2288, %v2287
        %v2316 = vpack.c.b16 %v2290, %v2289
        %v2317 = vpack.c.b16 %v2292, %v2291
        %v2318 = vpack.c.b16 %v2294, %v2293
        %v2319 = vpack.c.b16 %v2296, %v2295
        %v2320 = vpack.c.b16 %v2298, %v2297
        %v2321 = vpack.c.b16 %v2300, %v2299
        %v2322 = vpack.c.b16 %v2302, %v2301
        %v2323 = vpack.c.b16 %v2304, %v2303
        %v2324 = vpack.c.b16 %v2306, %v2305
        %v2325 = vpack.c.b16 %v2308, %v2307
        %v2326 = vpack.c.b16 %v2310, %v2309
        %v2328 = vsel %vm426, %v2311, 0
        %v2331 = vsel %vm426, %v2312, 0
        %v2334 = vsel %vm426, %v2313, 0
        %v2337 = vsel %vm426, %v2314, 0
        %v2340 = vsel %vm426, %v2315, 0
        %v2343 = vsel %vm426, %v2316, 0
        %v2346 = vsel %vm426, %v2317, 0
        %v2349 = vsel %vm426, %v2318, 0
        %v2352 = vsel %vm426, %v2319, 0
        %v2355 = vsel %vm426, %v2320, 0
        %v2358 = vsel %vm426, %v2321, 0
        %v2361 = vsel %vm426, %v2322, 0
        %v2364 = vsel %vm426, %v2323, 0
        %v2367 = vsel %vm426, %v2324, 0
        %v2370 = vsel %vm426, %v2325, 0
        %v2373 = vsel %vm426, %v2326, 0
        %v2376 = vsel %vm1384, %v2271, 0
        %2378 = vmatprep.subr.bf16.mxu0 0
        %2379 = vmatpush1.bf16.msra.mxu0 %v2376
        %2380 = vmatprep.subr.bf16.mxu0 0
        %2381 = vmatpush1.bf16.msra.mxu0 0
        %2382 = vmatprep.subr.bf16.mxu0 0
        %2383 = vmatpush1.bf16.msra.mxu0 0
        %2384 = vmatprep.subr.bf16.mxu0 0
        %2385 = vmatpush1.bf16.msra.mxu0 0
        %2386 = vmatprep.subr.bf16.mxu0 0
        %2387 = vmatpush1.bf16.msra.mxu0 0
        %2388 = vmatprep.subr.bf16.mxu0 0
        %2389 = vmatpush1.bf16.msra.mxu0 0
        %2390 = vmatprep.subr.bf16.mxu0 0
        %2391 = vmatpush1.bf16.msra.mxu0 0
        %2392 = vmatprep.subr.bf16.mxu0 0
        %2393 = vmatpush1.bf16.msra.mxu0 0
        %2394 = vmatprep.subr.bf16.mxu0 0
        %2395 = vmatpush1.bf16.msra.mxu0 0
        %2396 = vmatprep.subr.bf16.mxu0 0
        %2397 = vmatpush1.bf16.msra.mxu0 0
        %2398 = vmatprep.subr.bf16.mxu0 0
        %2399 = vmatpush1.bf16.msra.mxu0 0
        %2400 = vmatprep.subr.bf16.mxu0 0
        %2401 = vmatpush1.bf16.msra.mxu0 0
        %2402 = vmatprep.subr.bf16.mxu0 0
        %2403 = vmatpush1.bf16.msra.mxu0 0
        %2404 = vmatprep.subr.bf16.mxu0 0
        %2405 = vmatpush1.bf16.msra.mxu0 0
        %2406 = vmatprep.subr.bf16.mxu0 0
        %2407 = vmatpush1.bf16.msra.mxu0 0
        %2408 = vmatprep.subr.bf16.mxu0 0
        %2409 = vmatpush1.bf16.msra.mxu0 0
        %2410 = vmatprep.mubr.bf16.mxu0 0
        %2411 = vmatmul.mubr.bf16.gmra.mrb[0].mxu0 %v2328
        %v2412 = vpop.f32.mrb[0].mxu0
        %v2413 = vadd.f32 %v2277, %v2412
        %v2414 = vpop.f32.mrb[0].mxu0
        %v2415 = vpop.f32.mrb[0].mxu0
        %v2416 = vadd.f32 %v2277, %v2415
        %v2417 = vpop.f32.mrb[0].mxu0
        %2418 = vmatprep.mubr.bf16.mxu0 0
        %2419 = vmatmul.mubr.bf16.gmra.mrb[0].mxu0 %v2331
        %v2420 = vpop.f32.mrb[0].mxu0
        %v2421 = vadd.f32 %v2277, %v2420
        %v2422 = vpop.f32.mrb[0].mxu0
        %v2423 = vpop.f32.mrb[0].mxu0
        %v2424 = vadd.f32 %v2277, %v2423
        %v2425 = vpop.f32.mrb[0].mxu0
        %2426 = vmatprep.mubr.bf16.mxu0 0
        %2427 = vmatmul.mubr.bf16.gmra.mrb[0].mxu0 %v2334
        %v2428 = vpop.f32.mrb[0].mxu0
        %v2429 = vadd.f32 %v2277, %v2428
        %v2430 = vpop.f32.mrb[0].mxu0
        %v2431 = vpop.f32.mrb[0].mxu0
        %v2432 = vadd.f32 %v2277, %v2431
        %v2433 = vpop.f32.mrb[0].mxu0
        %2434 = vmatprep.mubr.bf16.mxu0 0
        %2435 = vmatmul.mubr.bf16.gmra.mrb[0].mxu0 %v2337
        %v2436 = vpop.f32.mrb[0].mxu0
        %v2437 = vadd.f32 %v2277, %v2436
        %v2438 = vpop.f32.mrb[0].mxu0
        %v2439 = vpop.f32.mrb[0].mxu0
        %v2440 = vadd.f32 %v2277, %v2439
        %v2441 = vpop.f32.mrb[0].mxu0
        %2442 = vmatprep.mubr.bf16.mxu0 0
        %2443 = vmatmul.mubr.bf16.gmra.mrb[0].mxu0 %v2340
        %v2444 = vpop.f32.mrb[0].mxu0
        %v2445 = vadd.f32 %v2277, %v2444
        %v2446 = vpop.f32.mrb[0].mxu0
        %v2447 = vpop.f32.mrb[0].mxu0
        %v2448 = vadd.f32 %v2277, %v2447
        %v2449 = vpop.f32.mrb[0].mxu0
        %2450 = vmatprep.mubr.bf16.mxu0 0
        %2451 = vmatmul.mubr.bf16.gmra.mrb[0].mxu0 %v2343
        %v2452 = vpop.f32.mrb[0].mxu0
        %v2453 = vadd.f32 %v2277, %v2452
        %v2454 = vpop.f32.mrb[0].mxu0
        %v2455 = vpop.f32.mrb[0].mxu0
        %v2456 = vadd.f32 %v2277, %v2455
        %v2457 = vpop.f32.mrb[0].mxu0
        %2458 = vmatprep.mubr.bf16.mxu0 0
        %2459 = vmatmul.mubr.bf16.gmra.mrb[0].mxu0 %v2346
        %v2460 = vpop.f32.mrb[0].mxu0
        %v2461 = vadd.f32 %v2277, %v2460
        %v2462 = vpop.f32.mrb[0].mxu0
        %v2463 = vpop.f32.mrb[0].mxu0
        %v2464 = vadd.f32 %v2277, %v2463
        %v2465 = vpop.f32.mrb[0].mxu0
        %2466 = vmatprep.mubr.bf16.mxu0 0
        %2467 = vmatmul.mubr.bf16.gmra.mrb[0].mxu0 %v2349
        %v2468 = vpop.f32.mrb[0].mxu0
        %v2469 = vadd.f32 %v2277, %v2468
        %v2470 = vpop.f32.mrb[0].mxu0
        %v2471 = vpop.f32.mrb[0].mxu0
        %v2472 = vadd.f32 %v2277, %v2471
        %v2473 = vpop.f32.mrb[0].mxu0
        %2474 = vmatprep.mubr.bf16.mxu0 0
        %2475 = vmatmul.mubr.bf16.gmra.mrb[0].mxu0 %v2352
        %v2476 = vpop.f32.mrb[0].mxu0
        %v2477 = vadd.f32 %v2277, %v2476
        %v2478 = vpop.f32.mrb[0].mxu0
        %v2479 = vpop.f32.mrb[0].mxu0
        %v2480 = vadd.f32 %v2277, %v2479
        %v2481 = vpop.f32.mrb[0].mxu0
        %2482 = vmatprep.mubr.bf16.mxu0 0
        %2483 = vmatmul.mubr.bf16.gmra.mrb[0].mxu0 %v2355
        %v2484 = vpop.f32.mrb[0].mxu0
        %v2485 = vadd.f32 %v2277, %v2484
        %v2486 = vpop.f32.mrb[0].mxu0
        %v2487 = vpop.f32.mrb[0].mxu0
        %v2488 = vadd.f32 %v2277, %v2487
        %v2489 = vpop.f32.mrb[0].mxu0
        %2490 = vmatprep.mubr.bf16.mxu0 0
        %2491 = vmatmul.mubr.bf16.gmra.mrb[0].mxu0 %v2358
        %v2492 = vpop.f32.mrb[0].mxu0
        %v2493 = vadd.f32 %v2277, %v2492
        %v2494 = vpop.f32.mrb[0].mxu0
        %v2495 = vpop.f32.mrb[0].mxu0
        %v2496 = vadd.f32 %v2277, %v2495
        %v2497 = vpop.f32.mrb[0].mxu0
        %2498 = vmatprep.mubr.bf16.mxu0 0
        %2499 = vmatmul.mubr.bf16.gmra.mrb[0].mxu0 %v2361
        %v2500 = vpop.f32.mrb[0].mxu0
        %v2501 = vadd.f32 %v2277, %v2500
        %v2502 = vpop.f32.mrb[0].mxu0
        %v2503 = vpop.f32.mrb[0].mxu0
        %v2504 = vadd.f32 %v2277, %v2503
        %v2505 = vpop.f32.mrb[0].mxu0
        %2506 = vmatprep.mubr.bf16.mxu0 0
        %2507 = vmatmul.mubr.bf16.gmra.mrb[0].mxu0 %v2364
        %v2508 = vpop.f32.mrb[0].mxu0
        %v2509 = vadd.f32 %v2277, %v2508
        %v2510 = vpop.f32.mrb[0].mxu0
        %v2511 = vpop.f32.mrb[0].mxu0
        %v2512 = vadd.f32 %v2277, %v2511
        %v2513 = vpop.f32.mrb[0].mxu0
        %2514 = vmatprep.mubr.bf16.mxu0 0
        %2515 = vmatmul.mubr.bf16.gmra.mrb[0].mxu0 %v2367
        %v2516 = vpop.f32.mrb[0].mxu0
        %v2517 = vadd.f32 %v2277, %v2516
        %v2518 = vpop.f32.mrb[0].mxu0
        %v2519 = vpop.f32.mrb[0].mxu0
        %v2520 = vadd.f32 %v2277, %v2519
        %v2521 = vpop.f32.mrb[0].mxu0
        %2522 = vmatprep.mubr.bf16.mxu0 0
        %2523 = vmatmul.mubr.bf16.gmra.mrb[0].mxu0 %v2370
        %v2524 = vpop.f32.mrb[0].mxu0
        %v2525 = vadd.f32 %v2277, %v2524
        %v2526 = vpop.f32.mrb[0].mxu0
        %v2527 = vpop.f32.mrb[0].mxu0
        %v2528 = vadd.f32 %v2277, %v2527
        %v2529 = vpop.f32.mrb[0].mxu0
        %2530 = vmatprep.mubr.bf16.mxu0 0
        %2531 = vmatmul.mubr.bf16.gmra.mrb[0].mxu0 %v2373
        %v2532 = vpop.f32.mrb[0].mxu0
        %v2533 = vadd.f32 %v2277, %v2532
        %v2534 = vpop.f32.mrb[0].mxu0
        %v2535 = vpop.f32.mrb[0].mxu0
        %v2536 = vadd.f32 %v2277, %v2535
        %v2537 = vpop.f32.mrb[0].mxu0
        %2538 = vdwg.mxu0
        %2539 = vst.msk [vmem:[%s274] sm:$0xff] %vm1549, %v2413
        %2540 = vst.msk [vmem:[%s274 + $0x8] sm:$0xff] %vm1549, %v2416
        %2541 = vst.msk [vmem:[%s274 + $0x10] sm:$0xff] %vm1549, %v2421
        %2542 = vst.msk [vmem:[%s274 + $0x18] sm:$0xff] %vm1549, %v2424
        %2543 = vst.msk [vmem:[%s274 + $0x20] sm:$0xff] %vm1549, %v2429
        %2544 = vst.msk [vmem:[%s274 + $0x28] sm:$0xff] %vm1549, %v2432
        %2545 = vst.msk [vmem:[%s274 + $0x30] sm:$0xff] %vm1549, %v2437
        %2546 = vst.msk [vmem:[%s274 + $0x38] sm:$0xff] %vm1549, %v2440
        %2547 = vst.msk [vmem:[%s274 + $0x40] sm:$0xff] %vm1549, %v2445
        %2548 = vst.msk [vmem:[%s274 + $0x48] sm:$0xff] %vm1549, %v2448
        %2549 = vst.msk [vmem:[%s274 + $0x50] sm:$0xff] %vm1549, %v2453
        %2550 = vst.msk [vmem:[%s274 + $0x58] sm:$0xff] %vm1549, %v2456
        %2551 = vst.msk [vmem:[%s274 + $0x60] sm:$0xff] %vm1549, %v2461
        %2552 = vst.msk [vmem:[%s274 + $0x68] sm:$0xff] %vm1549, %v2464
        %2553 = vst.msk [vmem:[%s274 + $0x70] sm:$0xff] %vm1549, %v2469
        %2554 = vst.msk [vmem:[%s274 + $0x78] sm:$0xff] %vm1549, %v2472
        %2555 = vst.msk [vmem:[%s274 + $0x80] sm:$0xff] %vm1549, %v2477
        %2556 = vst.msk [vmem:[%s274 + $0x88] sm:$0xff] %vm1549, %v2480
        %2557 = vst.msk [vmem:[%s274 + $0x90] sm:$0xff] %vm1549, %v2485
        %2558 = vst.msk [vmem:[%s274 + $0x98] sm:$0xff] %vm1549, %v2488
        %2559 = vst.msk [vmem:[%s274 + $0xa0] sm:$0xff] %vm1549, %v2493
        %2560 = vst.msk [vmem:[%s274 + $0xa8] sm:$0xff] %vm1549, %v2496
        %2561 = vst.msk [vmem:[%s274 + $0xb0] sm:$0xff] %vm1549, %v2501
        %2562 = vst.msk [vmem:[%s274 + $0xb8] sm:$0xff] %vm1549, %v2504
        %2563 = vst.msk [vmem:[%s274 + $0xc0] sm:$0xff] %vm1549, %v2509
        %2564 = vst.msk [vmem:[%s274 + $0xc8] sm:$0xff] %vm1549, %v2512
        %2565 = vst.msk [vmem:[%s274 + $0xd0] sm:$0xff] %vm1549, %v2517
        %2566 = vst.msk [vmem:[%s274 + $0xd8] sm:$0xff] %vm1549, %v2520
        %2567 = vst.msk [vmem:[%s274 + $0xe0] sm:$0xff] %vm1549, %v2525
        %2568 = vst.msk [vmem:[%s274 + $0xe8] sm:$0xff] %vm1549, %v2528
        %2569 = vst.msk [vmem:[%s274 + $0xf0] sm:$0xff] %vm1549, %v2533
        %2570 = vst.msk [vmem:[%s274 + $0xf8] sm:$0xff] %vm1549, %v2536
        %p2571 = scmp.lt.s32.totalorder %s21, 1
        %s2572 = scalar_select %p2571, %s21, 1
        %s2573 = smul.addr %s2572, 32
        %s2574 = smul.addr %s2573, 4
        %s2575 = scalar_lea.vmem %s4, %s2574
        %s2576 = sand.u32 %s144, 1
        %s2577 = scalar_lea.sflag [#allocation4], %s2576
        %s2578 = sand.u32 %s144, 1
        %s2579 = smul.addr %s2578, 2
        %s2580 = scalar_lea.vmem [#allocation3], %s2579
        %p2581 = scmp.lt.s32.totalorder %s21, 1
        %s2582 = scalar_select %p2581, %s21, 1
        %s2583 = smul.addr %s2582, 32
        %s2584 = smul.addr %s2583, 8
        %s2585 = scalar_lea.vmem %s6, %s2584
        // Predicated region
        $region37: #{tpu_custom_call.1} parent=35 // pred_check
          %p2586 = pneg %p128
        $region38: #{tpu_custom_call.1} parent=35 // pred_check_branch
          %2588 = sbr.rel (%p2586) target = $region40
        $region39: #{tpu_custom_call.1} parent=35 // pred_region
          _
        $region40: #{tpu_custom_call.1} parent=35 // pred_fallthru
          _
        // Predicated region
        $region41: #{tpu_custom_call.1} parent=35 // pred_check
          %p2589 = pneg %p154
        $region42: #{tpu_custom_call.1} parent=35 // pred_check_branch
          %2591 = sbr.rel (%p2589) target = $region44
        $region43: #{tpu_custom_call.1} parent=35 // pred_region
          %s2593 = ssub.s32 32, 32
          %2594 = vsyncadd %s2577, %s2593
          %s2595 = smul.addr %s21, 32
          %s2596 = scalar_lea.hbm %s5, %s2595
          %s2598 = sshll.u32 %s2580, 4
          %s2599 = int_to_ptr.vmem [resolvable:$true] %s2598
          %2601 = dma.vmem_to_hbm [thread:$0]  %s2599, 32, %s2596, %s2577
        $region44: #{tpu_custom_call.1} parent=35 // pred_fallthru
          _
        // Predicated region
        $region45: #{tpu_custom_call.1} parent=35 // pred_check
          %p2602 = pneg %p180
        $region46: #{tpu_custom_call.1} parent=35 // pred_check_branch
          %2604 = sbr.rel (%p2602) target = $region48
        $region47: #{tpu_custom_call.1} parent=35 // pred_region
          _
        $region48: #{tpu_custom_call.1} parent=35 // pred_fallthru
          _
      $region36: #{tpu_custom_call.1} parent=5 // pred_fallthru
        _
      %p2605 = scmp.le.s32.totalorder 2, %s16
      // Predicated region
      $region49: #{tpu_custom_call.1} parent=5 // pred_check
        %p2606 = pneg %p2605
      $region50: #{tpu_custom_call.1} parent=5 // pred_check_branch
        %2608 = sbr.rel (%p2606) target = $region52
      $region51: #{tpu_custom_call.1} parent=5 // pred_region
        %s2609 = ssub.s32 %s16, 2
        // Predicated region
        $region53: #{tpu_custom_call.1} parent=51 // pred_check
          %p2610 = pneg %p134
        $region54: #{tpu_custom_call.1} parent=51 // pred_check_branch
          %2612 = sbr.rel (%p2610) target = $region56
        $region55: #{tpu_custom_call.1} parent=51 // pred_region
          %p2613 = scmp.lt.s32.totalorder %s22, 1
          %s2614 = scalar_select %p2613, %s22, 1
          %s2615 = smul.addr %s2614, 32
          %s2616 = smul.addr %s2615, 4
          %s2617 = scalar_lea.vmem %s4, %s2616
        $region56: #{tpu_custom_call.1} parent=51 // pred_fallthru
          _
        // Predicated region
        $region57: #{tpu_custom_call.1} parent=51 // pred_check
          %p2618 = pneg %p160
        $region58: #{tpu_custom_call.1} parent=51 // pred_check_branch
          %2620 = sbr.rel (%p2618) target = $region60
        $region59: #{tpu_custom_call.1} parent=51 // pred_region
          %s2621 = sand.u32 %s145, 1
          %s2622 = scalar_lea.sflag [#allocation4], %s2621
          %s2623 = sand.u32 %s145, 1
          %s2624 = smul.addr %s2623, 2
          %s2625 = scalar_lea.vmem [#allocation3], %s2624
          %2626 = dma.done %s2622, 32
        $region60: #{tpu_custom_call.1} parent=51 // pred_fallthru
          _
        // Predicated region
        $region61: #{tpu_custom_call.1} parent=51 // pred_check
          %p2627 = pneg %p186
        $region62: #{tpu_custom_call.1} parent=51 // pred_check_branch
          %2629 = sbr.rel (%p2627) target = $region64
        $region63: #{tpu_custom_call.1} parent=51 // pred_region
          %p2630 = scmp.lt.s32.totalorder %s22, 1
          %s2631 = scalar_select %p2630, %s22, 1
          %s2632 = smul.addr %s2631, 32
          %s2633 = smul.addr %s2632, 8
          %s2634 = scalar_lea.vmem %s6, %s2633
        $region64: #{tpu_custom_call.1} parent=51 // pred_fallthru
          _
      $region52: #{tpu_custom_call.1} parent=5 // pred_fallthru
        _
    $region6: #{tpu_custom_call.1} parent=1 // loop_footer
      %s20 = sadd.s32 1, %s16
    $region7: #{tpu_custom_call.1} parent=1 // loop_footer_branch
      %15 = sbr.rel target = $region3
    $region8: #{tpu_custom_call.1} parent=1 // loop_exit
      _
    %2635 = vsyncpa [#allocation4], 1
    %s2636 = scalar_lea.sflag [#allocation4], 1
    %2637 = vsyncpa %s2636, 1

</llo_original>
